<compile_context>
chip_gen: v6e
topology: v6e:2x2x1
jax: 0.10.0
libtpu: 0.0.40
codegen_flags: <defaults>
</compile_context>

<pallas_src>
import functools

import jax
import jax.numpy as jnp
from jax.experimental import pallas as pl
from jax.experimental.pallas import tpu as pltpu


# ----------------------------------------------------------------------------- kernel
def _conv_mm_kernel(x_ref, w_ref, shift_ref, o_ref, *, activation):
    """One grid step = one batch image.

    x_ref:     (K, HW)   bf16   im2col'd input (K = 9*Cin), HW on the lane dim
    w_ref:     (Cout, K) bf16   conv weights, pre-scaled by the BN scale
    shift_ref: (Cout, 1) f32    folded conv-bias + BN shift
    o_ref:     (Cout, HW)       output tile (lane-dense along HW)
    """
    y = jnp.dot(w_ref[...], x_ref[...], preferred_element_type=jnp.float32)
    y = y + shift_ref[...]                      # (Cout,HW) + (Cout,1) broadcast
    if activation == "relu":
        y = jnp.maximum(y, 0.0)
    elif activation == "sigmoid":
        y = jax.nn.sigmoid(y)                   # EUP; fused final activation
    o_ref[...] = y.astype(o_ref.dtype)


# ----------------------------------------------------------------------------- conv wrapper
def _im2col_nchw(x):
    """(N, C, H, W) -> (N, 9*C, H*W); K ordered as (ky, kx) outer, channel inner."""
    N, C, H, W = x.shape
    xp = jnp.pad(x, ((0, 0), (0, 0), (1, 1), (1, 1)))
    cols = [xp[:, :, dy:dy + H, dx:dx + W].reshape(N, C, H * W)
            for dy in range(3) for dx in range(3)]
    return jnp.concatenate(cols, axis=1)


def conv3x3(x_nchw, w_oihw, shift, *, activation, out_dtype):
    """3x3 same-padding conv as a single matmul per image inside Pallas.

    `w_oihw` must already carry any per-channel scale (e.g. folded BN scale);
    `shift` is the per-channel additive term, shape (Cout, 1), f32.
    """
    N, Cin, H, W = x_nchw.shape
    Cout = w_oihw.shape[0]
    HW = H * W
    K = 9 * Cin

    x_cols = _im2col_nchw(x_nchw).astype(jnp.bfloat16)                # (N, K, HW)
    # OIHW -> (O, ky, kx, I) -> (Cout, 9*Cin): matches im2col K ordering.
    w_mat = jnp.transpose(w_oihw, (0, 2, 3, 1)).reshape(Cout, K).astype(jnp.bfloat16)

    kernel = functools.partial(_conv_mm_kernel, activation=activation)
    out = pl.pallas_call(
        kernel,
        out_shape=jax.ShapeDtypeStruct((N, Cout, HW), out_dtype),
        grid_spec=pltpu.PrefetchScalarGridSpec(
            num_scalar_prefetch=0,
            grid=(N,),                                                # batch only
            in_specs=[
                pl.BlockSpec((None, K, HW), lambda n: (n, 0, 0)),     # per-image im2col
                pl.BlockSpec((Cout, K),     lambda n: (0, 0)),        # weights: resident
                pl.BlockSpec((Cout, 1),     lambda n: (0, 0)),        # shift:   resident
            ],
            out_specs=pl.BlockSpec((None, Cout, HW), lambda n: (n, 0, 0)),
        ),
        compiler_params=pltpu.CompilerParams(
            dimension_semantics=("parallel",)),                       # megacore over N
    )(x_cols, w_mat, shift)

    return out.reshape(N, Cout, H, W)


# ----------------------------------------------------------------------------- layers
def _fold_bn(p, eps=1e-5):
    """Fold eval-mode BatchNorm (+ conv bias) into (scaled weights, shift)."""
    scale = p["bn_gamma"] / jnp.sqrt(p["bn_var"] + eps)               # (Cout,)
    w_scaled = p["conv_w"] * scale[:, None, None, None]
    shift = ((p["conv_b"] - p["bn_mean"]) * scale + p["bn_beta"])
    return w_scaled, shift.reshape(-1, 1).astype(jnp.float32)


def single_conv_fwd(x, p, *, out_dtype=jnp.bfloat16):
    """(conv 3x3, pad=1) => BN (eval mode) => ReLU."""
    # TODO(synk): training-mode batch-statistics BatchNorm is not reproduced;
    # running statistics are folded into a per-channel affine.
    w, shift = _fold_bn(p)
    return conv3x3(x, w, shift, activation="relu", out_dtype=out_dtype)


def maxpool2(x):
    """nn.MaxPool2d(2) on NCHW (plain-JAX glue)."""
    N, C, H, W = x.shape
    return jnp.max(x.reshape(N, C, H // 2, 2, W // 2, 2), axis=(3, 5))


def down_fwd(x, p):
    return single_conv_fwd(maxpool2(x), p)


def up_fwd(x1, x2, p):
    """up.forward(x1, x2): Upsample(size=2) -> pad -> cat([x2, x1]) -> single_conv."""
    # nn.Upsample(2): output spatial *size* = (2, 2), mode='nearest'
    # (PyTorch's literal semantics of Upsample(2); not scale_factor=2).
    N, C1, H1, W1 = x1.shape
    out_sz = 2
    ih = (jnp.arange(out_sz) * H1) // out_sz
    iw = (jnp.arange(out_sz) * W1) // out_sz
    x1u = x1[:, :, ih, :][:, :, :, iw]                                # (N, C1, 2, 2)

    H2, W2 = x2.shape[2], x2.shape[3]
    dY, dX = H2 - out_sz, W2 - out_sz
    x1p = jnp.pad(x1u, ((0, 0), (0, 0),
                        (dY // 2, dY - dY // 2),
                        (dX // 2, dX - dX // 2)))

    x = jnp.concatenate([x2, x1p.astype(x2.dtype)], axis=1)           # cat on channels
    return single_conv_fwd(x, p)


def outconv_fwd(x, p):
    """outconv (3x3 conv, bias, no BN/ReLU) with the final sigmoid fused in."""
    shift = p["conv_b"].reshape(-1, 1).astype(jnp.float32)
    return conv3x3(x, p["conv_w"], shift, activation="sigmoid",
                   out_dtype=jnp.float32)


def unet_forward(x, params):
    """UNet.forward(x), NCHW in / NCHW out (sigmoid applied)."""
    x1 = single_conv_fwd(x, params["inc"])          # (N, 16, H,   W)
    x2 = down_fwd(x1, params["down1"])              # (N, 32, H/2, W/2)
    x3 = down_fwd(x2, params["down2"])              # (N, 32, H/4, W/4)
    y = up_fwd(x3, x2, params["up1"])               # (N, 16, H/2, W/2)
    y = up_fwd(y, x1, params["up2"])                # (N, 16, H,   W)
    return outconv_fwd(y, params["outc"])           # (N, n_classes, H, W)


# ----------------------------------------------------------------------------- demo
def _conv_bn_params(key, in_ch, out_ch):
    kw, kb, kg, kbe = jax.random.split(key, 4)
    return {
        "conv_w": 0.1 * jax.random.normal(kw, (out_ch, in_ch, 3, 3), jnp.float32),
        "conv_b": 0.1 * jax.random.normal(kb, (out_ch,), jnp.float32),
        "bn_gamma": 1.0 + 0.1 * jax.random.normal(kg, (out_ch,), jnp.float32),
        "bn_beta": 0.1 * jax.random.normal(kbe, (out_ch,), jnp.float32),
        "bn_mean": jnp.zeros((out_ch,), jnp.float32),
        "bn_var": jnp.ones((out_ch,), jnp.float32),
    }


if __name__ == "__main__":
    key = jax.random.PRNGKey(0)
    keys = jax.random.split(key, 8)

    N, n_channels, n_classes, H, W = 2, 3, 2, 16, 16
    x = jax.random.normal(keys[0], (N, n_channels, H, W), jnp.float32)   # NCHW

    params = {
        "inc":   _conv_bn_params(keys[1], n_channels, 16),
        "down1": _conv_bn_params(keys[2], 16, 32),
        "down2": _conv_bn_params(keys[3], 32, 32),
        "up1":   _conv_bn_params(keys[4], 64, 16),
        "up2":   _conv_bn_params(keys[5], 32, 16),
        "outc": {
            "conv_w": 0.1 * jax.random.normal(keys[6], (n_classes, 16, 3, 3),
                                              jnp.float32),
            "conv_b": 0.1 * jax.random.normal(keys[7], (n_classes,), jnp.float32),
        },
    }

    out = jax.jit(unet_forward)(x, params)
    out = jax.block_until_ready(out)

    assert out.shape == (N, n_classes, H, W)
    assert bool(jnp.all((out >= 0.0) & (out <= 1.0)))   # sigmoid range sanity
    print("KERNEL_OK")
</pallas_src>

<mosaic_0001>
module attributes {stable_mosaic.version = 11 : i64} {
  func.func @_conv_mm_kernel(%arg0: i32, %arg1: memref<1x27x256xbf16, #tpu.memory_space<vmem>>, %arg2: memref<16x27xbf16, #tpu.memory_space<vmem>>, %arg3: memref<16x1xf32, #tpu.memory_space<vmem>>, %arg4: memref<1x16x256xbf16, #tpu.memory_space<vmem>>) attributes {dimension_semantics = [#tpu.dimension_semantics<parallel>], iteration_bounds = array<i64: 2>, scalar_prefetch = 0 : i64, scratch_operands = 0 : i64, tpu.core_type = #tpu.core_type<tc>, window_params = [{transform_indices = @transform_0, window_bounds = array<i64: 1, 27, 256>}, {pipeline_mode = #tpu.pipeline_mode<synchronous>, transform_indices = @transform_1, window_bounds = array<i64: 16, 27>}, {pipeline_mode = #tpu.pipeline_mode<synchronous>, transform_indices = @transform_2, window_bounds = array<i64: 16, 1>}, {transform_indices = @transform_3, window_bounds = array<i64: 1, 16, 256>}]} {
    %c0 = arith.constant 0 : index
    %c0_0 = arith.constant 0 : index
    %0 = vector.load %arg2[%c0, %c0_0] : memref<16x27xbf16, #tpu.memory_space<vmem>>, vector<16x27xbf16>
    %c0_1 = arith.constant 0 : index
    %c0_2 = arith.constant 0 : index
    %c0_3 = arith.constant 0 : index
    %1 = vector.load %arg1[%c0_1, %c0_2, %c0_3] : memref<1x27x256xbf16, #tpu.memory_space<vmem>>, vector<1x27x256xbf16>
    %2 = vector.shape_cast %1 : vector<1x27x256xbf16> to vector<27x256xbf16>
    %cst = arith.constant dense<0.000000e+00> : vector<16x256xf32>
    %3 = tpu.matmul %0, %2, %cst {dimension_numbers = #tpu.dot_dimension_numbers<[1], [0], [0], [1], [0, 0, 1, 1], [], []>} : vector<16x27xbf16>, vector<27x256xbf16>, vector<16x256xf32> -> vector<16x256xf32>
    %c0_4 = arith.constant 0 : index
    %c0_5 = arith.constant 0 : index
    %4 = vector.load %arg3[%c0_4, %c0_5] : memref<16x1xf32, #tpu.memory_space<vmem>>, vector<16x1xf32>
    %5 = vector.broadcast %4 : vector<16x1xf32> to vector<16x256xf32>
    %6 = arith.addf %3, %5 : vector<16x256xf32>
    %cst_6 = arith.constant 0.000000e+00 : f32
    %7 = vector.broadcast %cst_6 : f32 to vector<16x256xf32>
    %8 = arith.maximumf %6, %7 : vector<16x256xf32>
    %9 = arith.truncf %8 : vector<16x256xf32> to vector<16x256xbf16>
    %c0_7 = arith.constant 0 : index
    %c0_8 = arith.constant 0 : index
    %c0_9 = arith.constant 0 : index
    %10 = vector.load %arg4[%c0_7, %c0_8, %c0_9] : memref<1x16x256xbf16, #tpu.memory_space<vmem>>, vector<1x16x256xbf16>
    %11 = vector.shape_cast %10 : vector<1x16x256xbf16> to vector<16x256xbf16>
    %12 = vector.shape_cast %9 : vector<16x256xbf16> to vector<1x16x256xbf16>
    tpu.vector_store %arg4[%c0_7, %c0_8, %c0_9], %12 {strides = array<i32>} : memref<1x16x256xbf16, #tpu.memory_space<vmem>>, vector<1x16x256xbf16>,
    return
  }
  func.func @transform_0(%arg0: i32) -> (i32, i32, i32) {
    %c0_i32 = arith.constant 0 : i32
    %c0_i32_0 = arith.constant 0 : i32
    %c0_i32_1 = arith.constant 0 : i32
    return %arg0, %c0_i32, %c0_i32_0 : i32, i32, i32
  }
  func.func @transform_1(%arg0: i32) -> (i32, i32) {
    %c0_i32 = arith.constant 0 : i32
    %c0_i32_0 = arith.constant 0 : i32
    %c0_i32_1 = arith.constant 0 : i32
    return %c0_i32, %c0_i32_0 : i32, i32
  }
  func.func @transform_2(%arg0: i32) -> (i32, i32) {
    %c0_i32 = arith.constant 0 : i32
    %c0_i32_0 = arith.constant 0 : i32
    %c0_i32_1 = arith.constant 0 : i32
    return %c0_i32, %c0_i32_0 : i32, i32
  }
  func.func @transform_3(%arg0: i32) -> (i32, i32, i32) {
    %c0_i32 = arith.constant 0 : i32
    %c0_i32_0 = arith.constant 0 : i32
    %c0_i32_1 = arith.constant 0 : i32
    return %arg0, %c0_i32, %c0_i32_0 : i32, i32, i32
  }
}

module attributes {stable_mosaic.version = 11 : i64} {
  func.func @_conv_mm_kernel(%arg0: i32, %arg1: memref<1x144x64xbf16, #tpu.memory_space<vmem>>, %arg2: memref<32x144xbf16, #tpu.memory_space<vmem>>, %arg3: memref<32x1xf32, #tpu.memory_space<vmem>>, %arg4: memref<1x32x64xbf16, #tpu.memory_space<vmem>>) attributes {dimension_semantics = [#tpu.dimension_semantics<parallel>], iteration_bounds = array<i64: 2>, scalar_prefetch = 0 : i64, scratch_operands = 0 : i64, tpu.core_type = #tpu.core_type<tc>, window_params = [{transform_indices = @transform_0, window_bounds = array<i64: 1, 144, 64>}, {pipeline_mode = #tpu.pipeline_mode<synchronous>, transform_indices = @transform_1, window_bounds = array<i64: 32, 144>}, {pipeline_mode = #tpu.pipeline_mode<synchronous>, transform_indices = @transform_2, window_bounds = array<i64: 32, 1>}, {transform_indices = @transform_3, window_bounds = array<i64: 1, 32, 64>}]} {
    %c0 = arith.constant 0 : index
    %c0_0 = arith.constant 0 : index
    %0 = vector.load %arg2[%c0, %c0_0] : memref<32x144xbf16, #tpu.memory_space<vmem>>, vector<32x144xbf16>
    %c0_1 = arith.constant 0 : index
    %c0_2 = arith.constant 0 : index
    %c0_3 = arith.constant 0 : index
    %1 = vector.load %arg1[%c0_1, %c0_2, %c0_3] : memref<1x144x64xbf16, #tpu.memory_space<vmem>>, vector<1x144x64xbf16>
    %2 = vector.shape_cast %1 : vector<1x144x64xbf16> to vector<144x64xbf16>
    %cst = arith.constant dense<0.000000e+00> : vector<32x64xf32>
    %3 = tpu.matmul %0, %2, %cst {dimension_numbers = #tpu.dot_dimension_numbers<[1], [0], [0], [1], [0, 0, 1, 1], [], []>} : vector<32x144xbf16>, vector<144x64xbf16>, vector<32x64xf32> -> vector<32x64xf32>
    %c0_4 = arith.constant 0 : index
    %c0_5 = arith.constant 0 : index
    %4 = vector.load %arg3[%c0_4, %c0_5] : memref<32x1xf32, #tpu.memory_space<vmem>>, vector<32x1xf32>
    %5 = vector.broadcast %4 : vector<32x1xf32> to vector<32x64xf32>
    %6 = arith.addf %3, %5 : vector<32x64xf32>
    %cst_6 = arith.constant 0.000000e+00 : f32
    %7 = vector.broadcast %cst_6 : f32 to vector<32x64xf32>
    %8 = arith.maximumf %6, %7 : vector<32x64xf32>
    %9 = arith.truncf %8 : vector<32x64xf32> to vector<32x64xbf16>
    %c0_7 = arith.constant 0 : index
    %c0_8 = arith.constant 0 : index
    %c0_9 = arith.constant 0 : index
    %10 = vector.load %arg4[%c0_7, %c0_8, %c0_9] : memref<1x32x64xbf16, #tpu.memory_space<vmem>>, vector<1x32x64xbf16>
    %11 = vector.shape_cast %10 : vector<1x32x64xbf16> to vector<32x64xbf16>
    %12 = vector.shape_cast %9 : vector<32x64xbf16> to vector<1x32x64xbf16>
    tpu.vector_store %arg4[%c0_7, %c0_8, %c0_9], %12 {strides = array<i32>} : memref<1x32x64xbf16, #tpu.memory_space<vmem>>, vector<1x32x64xbf16>,
    return
  }
  func.func @transform_0(%arg0: i32) -> (i32, i32, i32) {
    %c0_i32 = arith.constant 0 : i32
    %c0_i32_0 = arith.constant 0 : i32
    %c0_i32_1 = arith.constant 0 : i32
    return %arg0, %c0_i32, %c0_i32_0 : i32, i32, i32
  }
  func.func @transform_1(%arg0: i32) -> (i32, i32) {
    %c0_i32 = arith.constant 0 : i32
    %c0_i32_0 = arith.constant 0 : i32
    %c0_i32_1 = arith.constant 0 : i32
    return %c0_i32, %c0_i32_0 : i32, i32
  }
  func.func @transform_2(%arg0: i32) -> (i32, i32) {
    %c0_i32 = arith.constant 0 : i32
    %c0_i32_0 = arith.constant 0 : i32
    %c0_i32_1 = arith.constant 0 : i32
    return %c0_i32, %c0_i32_0 : i32, i32
  }
  func.func @transform_3(%arg0: i32) -> (i32, i32, i32) {
    %c0_i32 = arith.constant 0 : i32
    %c0_i32_0 = arith.constant 0 : i32
    %c0_i32_1 = arith.constant 0 : i32
    return %arg0, %c0_i32, %c0_i32_0 : i32, i32, i32
  }
}

module attributes {stable_mosaic.version = 11 : i64} {
  func.func @_conv_mm_kernel(%arg0: i32, %arg1: memref<1x288x16xbf16, #tpu.memory_space<vmem>>, %arg2: memref<32x288xbf16, #tpu.memory_space<vmem>>, %arg3: memref<32x1xf32, #tpu.memory_space<vmem>>, %arg4: memref<1x32x16xbf16, #tpu.memory_space<vmem>>) attributes {dimension_semantics = [#tpu.dimension_semantics<parallel>], iteration_bounds = array<i64: 2>, scalar_prefetch = 0 : i64, scratch_operands = 0 : i64, tpu.core_type = #tpu.core_type<tc>, window_params = [{transform_indices = @transform_0, window_bounds = array<i64: 1, 288, 16>}, {pipeline_mode = #tpu.pipeline_mode<synchronous>, transform_indices = @transform_1, window_bounds = array<i64: 32, 288>}, {pipeline_mode = #tpu.pipeline_mode<synchronous>, transform_indices = @transform_2, window_bounds = array<i64: 32, 1>}, {transform_indices = @transform_3, window_bounds = array<i64: 1, 32, 16>}]} {
    %c0 = arith.constant 0 : index
    %c0_0 = arith.constant 0 : index
    %0 = vector.load %arg2[%c0, %c0_0] : memref<32x288xbf16, #tpu.memory_space<vmem>>, vector<32x288xbf16>
    %c0_1 = arith.constant 0 : index
    %c0_2 = arith.constant 0 : index
    %c0_3 = arith.constant 0 : index
    %1 = vector.load %arg1[%c0_1, %c0_2, %c0_3] : memref<1x288x16xbf16, #tpu.memory_space<vmem>>, vector<1x288x16xbf16>
    %2 = vector.shape_cast %1 : vector<1x288x16xbf16> to vector<288x16xbf16>
    %cst = arith.constant dense<0.000000e+00> : vector<32x16xf32>
    %3 = tpu.matmul %0, %2, %cst {dimension_numbers = #tpu.dot_dimension_numbers<[1], [0], [0], [1], [0, 0, 1, 1], [], []>} : vector<32x288xbf16>, vector<288x16xbf16>, vector<32x16xf32> -> vector<32x16xf32>
    %c0_4 = arith.constant 0 : index
    %c0_5 = arith.constant 0 : index
    %4 = vector.load %arg3[%c0_4, %c0_5] : memref<32x1xf32, #tpu.memory_space<vmem>>, vector<32x1xf32>
    %5 = vector.broadcast %4 : vector<32x1xf32> to vector<32x16xf32>
    %6 = arith.addf %3, %5 : vector<32x16xf32>
    %cst_6 = arith.constant 0.000000e+00 : f32
    %7 = vector.broadcast %cst_6 : f32 to vector<32x16xf32>
    %8 = arith.maximumf %6, %7 : vector<32x16xf32>
    %9 = arith.truncf %8 : vector<32x16xf32> to vector<32x16xbf16>
    %c0_7 = arith.constant 0 : index
    %c0_8 = arith.constant 0 : index
    %c0_9 = arith.constant 0 : index
    %10 = vector.load %arg4[%c0_7, %c0_8, %c0_9] : memref<1x32x16xbf16, #tpu.memory_space<vmem>>, vector<1x32x16xbf16>
    %11 = vector.shape_cast %10 : vector<1x32x16xbf16> to vector<32x16xbf16>
    %12 = vector.shape_cast %9 : vector<32x16xbf16> to vector<1x32x16xbf16>
    tpu.vector_store %arg4[%c0_7, %c0_8, %c0_9], %12 {strides = array<i32>} : memref<1x32x16xbf16, #tpu.memory_space<vmem>>, vector<1x32x16xbf16>,
    return
  }
  func.func @transform_0(%arg0: i32) -> (i32, i32, i32) {
    %c0_i32 = arith.constant 0 : i32
    %c0_i32_0 = arith.constant 0 : i32
    %c0_i32_1 = arith.constant 0 : i32
    return %arg0, %c0_i32, %c0_i32_0 : i32, i32, i32
  }
  func.func @transform_1(%arg0: i32) -> (i32, i32) {
    %c0_i32 = arith.constant 0 : i32
    %c0_i32_0 = arith.constant 0 : i32
    %c0_i32_1 = arith.constant 0 : i32
    return %c0_i32, %c0_i32_0 : i32, i32
  }
  func.func @transform_2(%arg0: i32) -> (i32, i32) {
    %c0_i32 = arith.constant 0 : i32
    %c0_i32_0 = arith.constant 0 : i32
    %c0_i32_1 = arith.constant 0 : i32
    return %c0_i32, %c0_i32_0 : i32, i32
  }
  func.func @transform_3(%arg0: i32) -> (i32, i32, i32) {
    %c0_i32 = arith.constant 0 : i32
    %c0_i32_0 = arith.constant 0 : i32
    %c0_i32_1 = arith.constant 0 : i32
    return %arg0, %c0_i32, %c0_i32_0 : i32, i32, i32
  }
}

module attributes {stable_mosaic.version = 11 : i64} {
  func.func @_conv_mm_kernel(%arg0: i32, %arg1: memref<1x576x64xbf16, #tpu.memory_space<vmem>>, %arg2: memref<16x576xbf16, #tpu.memory_space<vmem>>, %arg3: memref<16x1xf32, #tpu.memory_space<vmem>>, %arg4: memref<1x16x64xbf16, #tpu.memory_space<vmem>>) attributes {dimension_semantics = [#tpu.dimension_semantics<parallel>], iteration_bounds = array<i64: 2>, scalar_prefetch = 0 : i64, scratch_operands = 0 : i64, tpu.core_type = #tpu.core_type<tc>, window_params = [{transform_indices = @transform_0, window_bounds = array<i64: 1, 576, 64>}, {pipeline_mode = #tpu.pipeline_mode<synchronous>, transform_indices = @transform_1, window_bounds = array<i64: 16, 576>}, {pipeline_mode = #tpu.pipeline_mode<synchronous>, transform_indices = @transform_2, window_bounds = array<i64: 16, 1>}, {transform_indices = @transform_3, window_bounds = array<i64: 1, 16, 64>}]} {
    %c0 = arith.constant 0 : index
    %c0_0 = arith.constant 0 : index
    %0 = vector.load %arg2[%c0, %c0_0] : memref<16x576xbf16, #tpu.memory_space<vmem>>, vector<16x576xbf16>
    %c0_1 = arith.constant 0 : index
    %c0_2 = arith.constant 0 : index
    %c0_3 = arith.constant 0 : index
    %1 = vector.load %arg1[%c0_1, %c0_2, %c0_3] : memref<1x576x64xbf16, #tpu.memory_space<vmem>>, vector<1x576x64xbf16>
    %2 = vector.shape_cast %1 : vector<1x576x64xbf16> to vector<576x64xbf16>
    %cst = arith.constant dense<0.000000e+00> : vector<16x64xf32>
    %3 = tpu.matmul %0, %2, %cst {dimension_numbers = #tpu.dot_dimension_numbers<[1], [0], [0], [1], [0, 0, 1, 1], [], []>} : vector<16x576xbf16>, vector<576x64xbf16>, vector<16x64xf32> -> vector<16x64xf32>
    %c0_4 = arith.constant 0 : index
    %c0_5 = arith.constant 0 : index
    %4 = vector.load %arg3[%c0_4, %c0_5] : memref<16x1xf32, #tpu.memory_space<vmem>>, vector<16x1xf32>
    %5 = vector.broadcast %4 : vector<16x1xf32> to vector<16x64xf32>
    %6 = arith.addf %3, %5 : vector<16x64xf32>
    %cst_6 = arith.constant 0.000000e+00 : f32
    %7 = vector.broadcast %cst_6 : f32 to vector<16x64xf32>
    %8 = arith.maximumf %6, %7 : vector<16x64xf32>
    %9 = arith.truncf %8 : vector<16x64xf32> to vector<16x64xbf16>
    %c0_7 = arith.constant 0 : index
    %c0_8 = arith.constant 0 : index
    %c0_9 = arith.constant 0 : index
    %10 = vector.load %arg4[%c0_7, %c0_8, %c0_9] : memref<1x16x64xbf16, #tpu.memory_space<vmem>>, vector<1x16x64xbf16>
    %11 = vector.shape_cast %10 : vector<1x16x64xbf16> to vector<16x64xbf16>
    %12 = vector.shape_cast %9 : vector<16x64xbf16> to vector<1x16x64xbf16>
    tpu.vector_store %arg4[%c0_7, %c0_8, %c0_9], %12 {strides = array<i32>} : memref<1x16x64xbf16, #tpu.memory_space<vmem>>, vector<1x16x64xbf16>,
    return
  }
  func.func @transform_0(%arg0: i32) -> (i32, i32, i32) {
    %c0_i32 = arith.constant 0 : i32
    %c0_i32_0 = arith.constant 0 : i32
    %c0_i32_1 = arith.constant 0 : i32
    return %arg0, %c0_i32, %c0_i32_0 : i32, i32, i32
  }
  func.func @transform_1(%arg0: i32) -> (i32, i32) {
    %c0_i32 = arith.constant 0 : i32
    %c0_i32_0 = arith.constant 0 : i32
    %c0_i32_1 = arith.constant 0 : i32
    return %c0_i32, %c0_i32_0 : i32, i32
  }
  func.func @transform_2(%arg0: i32) -> (i32, i32) {
    %c0_i32 = arith.constant 0 : i32
    %c0_i32_0 = arith.constant 0 : i32
    %c0_i32_1 = arith.constant 0 : i32
    return %c0_i32, %c0_i32_0 : i32, i32
  }
  func.func @transform_3(%arg0: i32) -> (i32, i32, i32) {
    %c0_i32 = arith.constant 0 : i32
    %c0_i32_0 = arith.constant 0 : i32
    %c0_i32_1 = arith.constant 0 : i32
    return %arg0, %c0_i32, %c0_i32_0 : i32, i32, i32
  }
}

module attributes {stable_mosaic.version = 11 : i64} {
  func.func @_conv_mm_kernel(%arg0: i32, %arg1: memref<1x288x256xbf16, #tpu.memory_space<vmem>>, %arg2: memref<16x288xbf16, #tpu.memory_space<vmem>>, %arg3: memref<16x1xf32, #tpu.memory_space<vmem>>, %arg4: memref<1x16x256xbf16, #tpu.memory_space<vmem>>) attributes {dimension_semantics = [#tpu.dimension_semantics<parallel>], iteration_bounds = array<i64: 2>, scalar_prefetch = 0 : i64, scratch_operands = 0 : i64, tpu.core_type = #tpu.core_type<tc>, window_params = [{transform_indices = @transform_0, window_bounds = array<i64: 1, 288, 256>}, {pipeline_mode = #tpu.pipeline_mode<synchronous>, transform_indices = @transform_1, window_bounds = array<i64: 16, 288>}, {pipeline_mode = #tpu.pipeline_mode<synchronous>, transform_indices = @transform_2, window_bounds = array<i64: 16, 1>}, {transform_indices = @transform_3, window_bounds = array<i64: 1, 16, 256>}]} {
    %c0 = arith.constant 0 : index
    %c0_0 = arith.constant 0 : index
    %0 = vector.load %arg2[%c0, %c0_0] : memref<16x288xbf16, #tpu.memory_space<vmem>>, vector<16x288xbf16>
    %c0_1 = arith.constant 0 : index
    %c0_2 = arith.constant 0 : index
    %c0_3 = arith.constant 0 : index
    %1 = vector.load %arg1[%c0_1, %c0_2, %c0_3] : memref<1x288x256xbf16, #tpu.memory_space<vmem>>, vector<1x288x256xbf16>
    %2 = vector.shape_cast %1 : vector<1x288x256xbf16> to vector<288x256xbf16>
    %cst = arith.constant dense<0.000000e+00> : vector<16x256xf32>
    %3 = tpu.matmul %0, %2, %cst {dimension_numbers = #tpu.dot_dimension_numbers<[1], [0], [0], [1], [0, 0, 1, 1], [], []>} : vector<16x288xbf16>, vector<288x256xbf16>, vector<16x256xf32> -> vector<16x256xf32>
    %c0_4 = arith.constant 0 : index
    %c0_5 = arith.constant 0 : index
    %4 = vector.load %arg3[%c0_4, %c0_5] : memref<16x1xf32, #tpu.memory_space<vmem>>, vector<16x1xf32>
    %5 = vector.broadcast %4 : vector<16x1xf32> to vector<16x256xf32>
    %6 = arith.addf %3, %5 : vector<16x256xf32>
    %cst_6 = arith.constant 0.000000e+00 : f32
    %7 = vector.broadcast %cst_6 : f32 to vector<16x256xf32>
    %8 = arith.maximumf %6, %7 : vector<16x256xf32>
    %9 = arith.truncf %8 : vector<16x256xf32> to vector<16x256xbf16>
    %c0_7 = arith.constant 0 : index
    %c0_8 = arith.constant 0 : index
    %c0_9 = arith.constant 0 : index
    %10 = vector.load %arg4[%c0_7, %c0_8, %c0_9] : memref<1x16x256xbf16, #tpu.memory_space<vmem>>, vector<1x16x256xbf16>
    %11 = vector.shape_cast %10 : vector<1x16x256xbf16> to vector<16x256xbf16>
    %12 = vector.shape_cast %9 : vector<16x256xbf16> to vector<1x16x256xbf16>
    tpu.vector_store %arg4[%c0_7, %c0_8, %c0_9], %12 {strides = array<i32>} : memref<1x16x256xbf16, #tpu.memory_space<vmem>>, vector<1x16x256xbf16>,
    return
  }
  func.func @transform_0(%arg0: i32) -> (i32, i32, i32) {
    %c0_i32 = arith.constant 0 : i32
    %c0_i32_0 = arith.constant 0 : i32
    %c0_i32_1 = arith.constant 0 : i32
    return %arg0, %c0_i32, %c0_i32_0 : i32, i32, i32
  }
  func.func @transform_1(%arg0: i32) -> (i32, i32) {
    %c0_i32 = arith.constant 0 : i32
    %c0_i32_0 = arith.constant 0 : i32
    %c0_i32_1 = arith.constant 0 : i32
    return %c0_i32, %c0_i32_0 : i32, i32
  }
  func.func @transform_2(%arg0: i32) -> (i32, i32) {
    %c0_i32 = arith.constant 0 : i32
    %c0_i32_0 = arith.constant 0 : i32
    %c0_i32_1 = arith.constant 0 : i32
    return %c0_i32, %c0_i32_0 : i32, i32
  }
  func.func @transform_3(%arg0: i32) -> (i32, i32, i32) {
    %c0_i32 = arith.constant 0 : i32
    %c0_i32_0 = arith.constant 0 : i32
    %c0_i32_1 = arith.constant 0 : i32
    return %arg0, %c0_i32, %c0_i32_0 : i32, i32, i32
  }
}

module attributes {stable_mosaic.version = 11 : i64} {
  func.func @_conv_mm_kernel(%arg0: i32, %arg1: memref<1x144x256xbf16, #tpu.memory_space<vmem>>, %arg2: memref<2x144xbf16, #tpu.memory_space<vmem>>, %arg3: memref<2x1xf32, #tpu.memory_space<vmem>>, %arg4: memref<1x2x256xf32, #tpu.memory_space<vmem>>) attributes {dimension_semantics = [#tpu.dimension_semantics<parallel>], iteration_bounds = array<i64: 2>, scalar_prefetch = 0 : i64, scratch_operands = 0 : i64, tpu.core_type = #tpu.core_type<tc>, window_params = [{transform_indices = @transform_0, window_bounds = array<i64: 1, 144, 256>}, {pipeline_mode = #tpu.pipeline_mode<synchronous>, transform_indices = @transform_1, window_bounds = array<i64: 2, 144>}, {pipeline_mode = #tpu.pipeline_mode<synchronous>, transform_indices = @transform_2, window_bounds = array<i64: 2, 1>}, {transform_indices = @transform_3, window_bounds = array<i64: 1, 2, 256>}]} {
    %c0 = arith.constant 0 : index
    %c0_0 = arith.constant 0 : index
    %0 = vector.load %arg2[%c0, %c0_0] : memref<2x144xbf16, #tpu.memory_space<vmem>>, vector<2x144xbf16>
    %c0_1 = arith.constant 0 : index
    %c0_2 = arith.constant 0 : index
    %c0_3 = arith.constant 0 : index
    %1 = vector.load %arg1[%c0_1, %c0_2, %c0_3] : memref<1x144x256xbf16, #tpu.memory_space<vmem>>, vector<1x144x256xbf16>
    %2 = vector.shape_cast %1 : vector<1x144x256xbf16> to vector<144x256xbf16>
    %cst = arith.constant dense<0.000000e+00> : vector<2x256xf32>
    %3 = tpu.matmul %0, %2, %cst {dimension_numbers = #tpu.dot_dimension_numbers<[1], [0], [0], [1], [0, 0, 1, 1], [], []>} : vector<2x144xbf16>, vector<144x256xbf16>, vector<2x256xf32> -> vector<2x256xf32>
    %c0_4 = arith.constant 0 : index
    %c0_5 = arith.constant 0 : index
    %4 = vector.load %arg3[%c0_4, %c0_5] : memref<2x1xf32, #tpu.memory_space<vmem>>, vector<2x1xf32>
    %5 = vector.broadcast %4 : vector<2x1xf32> to vector<2x256xf32>
    %6 = arith.addf %3, %5 : vector<2x256xf32>
    %7 = arith.negf %6 : vector<2x256xf32>
    %8 = math.exp %7 : vector<2x256xf32>
    %cst_6 = arith.constant 1.000000e+00 : f32
    %9 = vector.broadcast %cst_6 : f32 to vector<2x256xf32>
    %10 = arith.addf %9, %8 : vector<2x256xf32>
    %11 = arith.divf %9, %10 : vector<2x256xf32>
    %c0_7 = arith.constant 0 : index
    %c0_8 = arith.constant 0 : index
    %c0_9 = arith.constant 0 : index
    %12 = vector.load %arg4[%c0_7, %c0_8, %c0_9] : memref<1x2x256xf32, #tpu.memory_space<vmem>>, vector<1x2x256xf32>
    %13 = vector.shape_cast %12 : vector<1x2x256xf32> to vector<2x256xf32>
    %14 = vector.shape_cast %11 : vector<2x256xf32> to vector<1x2x256xf32>
    tpu.vector_store %arg4[%c0_7, %c0_8, %c0_9], %14 {strides = array<i32>} : memref<1x2x256xf32, #tpu.memory_space<vmem>>, vector<1x2x256xf32>,
    return
  }
  func.func @transform_0(%arg0: i32) -> (i32, i32, i32) {
    %c0_i32 = arith.constant 0 : i32
    %c0_i32_0 = arith.constant 0 : i32
    %c0_i32_1 = arith.constant 0 : i32
    return %arg0, %c0_i32, %c0_i32_0 : i32, i32, i32
  }
  func.func @transform_1(%arg0: i32) -> (i32, i32) {
    %c0_i32 = arith.constant 0 : i32
    %c0_i32_0 = arith.constant 0 : i32
    %c0_i32_1 = arith.constant 0 : i32
    return %c0_i32, %c0_i32_0 : i32, i32
  }
  func.func @transform_2(%arg0: i32) -> (i32, i32) {
    %c0_i32 = arith.constant 0 : i32
    %c0_i32_0 = arith.constant 0 : i32
    %c0_i32_1 = arith.constant 0 : i32
    return %c0_i32, %c0_i32_0 : i32, i32
  }
  func.func @transform_3(%arg0: i32) -> (i32, i32, i32) {
    %c0_i32 = arith.constant 0 : i32
    %c0_i32_0 = arith.constant 0 : i32
    %c0_i32_1 = arith.constant 0 : i32
    return %arg0, %c0_i32, %c0_i32_0 : i32, i32, i32
  }
}

</mosaic_0001>

<llo_original>
// kernel: unet_forward.6
$region0: #{unet_forward.6}
  #allocation0 [shape = 'u32[]', space=smem, size = 0x4, offset = 0x4, fixed_abs, tag = 'smem constant byte address 0x4 - core index']
  #allocation1 [shape = 'u32[144,128]{1,0:T(1,128)}', space=vmem, size = 0x12000, scoped, tag = 'internal scratch']
  %s0 = inlined_call_operand.vmem [shape: bf16[2,27,256], index: 0, kind: input, shape index: {}]
  %s1 = inlined_call_operand.vmem [shape: bf16[16,27], index: 1, kind: input, shape index: {}]
  %s2 = inlined_call_operand.vmem [shape: f32[16,1], index: 2, kind: input, shape index: {}]
  %s3 = inlined_call_operand.vmem [shape: bf16[2,16,256], index: 3, kind: output, shape index: {}]
  %s4 = sld [smem:[#allocation0]]
  $region45: #{unet_forward.6} parent=0
    _
  %s6 = ssub.s32 1, %s4
  %s7 = scalar_select 0, %s6, %s4
  loop: start=0, step=1, limit=4
  $region2: #{unet_forward.6} parent=0 // loop_pre_header
    _
  $region3: #{unet_forward.6} parent=0 // loop_header
    %s9 = sphi 0, %s13
    %p10 = scmp.ge.s32.totalorder %s9, 4
    %s19 = sphi 0, %s21
    %s22 = sphi 0, %s19
    %s23 = sphi 0, %s22
    %s39 = sphi 0, %s23
    %s43 = sphi 0, %s43
    %s45 = sphi 0, %s43
    %s46 = sphi 0, %s45
    %s60 = sphi 0, %s46
    %s64 = sphi 0, %s64
    %s66 = sphi 0, %s64
    %s67 = sphi 0, %s66
    %s81 = sphi 0, %s67
    %s87 = sphi 0, %s89
    %s90 = sphi 0, %s87
    %s91 = sphi 0, %s90
    %s107 = sphi 0, %s91
  $region4: #{unet_forward.6} parent=0 // loop_header_branch
    %12 = sbr.rel (%p10) target = $region8
  $region5: #{unet_forward.6} parent=0 // loop_body
    %s14 = ssub.s32 %s9, 1
    %s15 = ssub.s32 %s9, 2
    %s16 = sadd.s32 %s9, 1
    %s17 = ssub.s32 %s9, %s16
    %p18 = scmp.eq.s32.totalorder %s17, 0
    %s20 = sadd.s32 %s19, 1
    %s21 = scalar_select %p18, %s19, %s20
    %p24 = pneg %p18
    %p25 = scmp.eq.s32.totalorder %s9, 1
    %p26 = por %p24, %p25
    %p27 = scmp.ne.s32.totalorder %s19, %s22
    %p28 = scmp.eq.s32.totalorder %s9, 0
    %p29 = por %p27, %p28
    %p30 = scmp.ne.s32.totalorder %s19, %s22
    %p31 = scmp.eq.s32.totalorder %s14, 1
    %p32 = por %p30, %p31
    %p33 = scmp.ne.s32.totalorder %s22, %s23
    %p34 = scmp.eq.s32.totalorder %s14, 0
    %p35 = por %p33, %p34
    %p36 = scmp.ne.s32.totalorder %s22, %s23
    %p37 = scmp.eq.s32.totalorder %s15, 1
    %p38 = por %p36, %p37
    %p40 = scmp.ne.s32.totalorder %s23, %s39
    %p41 = scmp.eq.s32.totalorder %s15, 0
    %p42 = por %p40, %p41
    %s44 = sadd.s32 %s43, 1
    %p47 = scmp.eq.s32.totalorder %s9, 1
    %p48 = scmp.ne.s32.totalorder %s43, %s45
    %p49 = scmp.eq.s32.totalorder %s9, 0
    %p50 = por %p48, %p49
    %p51 = scmp.ne.s32.totalorder %s43, %s45
    %p52 = scmp.eq.s32.totalorder %s14, 1
    %p53 = por %p51, %p52
    %p54 = scmp.ne.s32.totalorder %s45, %s46
    %p55 = scmp.eq.s32.totalorder %s14, 0
    %p56 = por %p54, %p55
    %p57 = scmp.ne.s32.totalorder %s45, %s46
    %p58 = scmp.eq.s32.totalorder %s15, 1
    %p59 = por %p57, %p58
    %p61 = scmp.ne.s32.totalorder %s46, %s60
    %p62 = scmp.eq.s32.totalorder %s15, 0
    %p63 = por %p61, %p62
    %s65 = sadd.s32 %s64, 1
    %p68 = scmp.eq.s32.totalorder %s9, 1
    %p69 = scmp.ne.s32.totalorder %s64, %s66
    %p70 = scmp.eq.s32.totalorder %s9, 0
    %p71 = por %p69, %p70
    %p72 = scmp.ne.s32.totalorder %s64, %s66
    %p73 = scmp.eq.s32.totalorder %s14, 1
    %p74 = por %p72, %p73
    %p75 = scmp.ne.s32.totalorder %s66, %s67
    %p76 = scmp.eq.s32.totalorder %s14, 0
    %p77 = por %p75, %p76
    %p78 = scmp.ne.s32.totalorder %s66, %s67
    %p79 = scmp.eq.s32.totalorder %s15, 1
    %p80 = por %p78, %p79
    %p82 = scmp.ne.s32.totalorder %s67, %s81
    %p83 = scmp.eq.s32.totalorder %s15, 0
    %p84 = por %p82, %p83
    %s85 = ssub.s32 %s9, %s16
    %p86 = scmp.eq.s32.totalorder %s85, 0
    %s88 = sadd.s32 %s87, 1
    %s89 = scalar_select %p86, %s87, %s88
    %p92 = pneg %p86
    %p93 = scmp.eq.s32.totalorder %s9, 1
    %p94 = por %p92, %p93
    %p95 = scmp.ne.s32.totalorder %s87, %s90
    %p96 = scmp.eq.s32.totalorder %s9, 0
    %p97 = por %p95, %p96
    %p98 = scmp.ne.s32.totalorder %s87, %s90
    %p99 = scmp.eq.s32.totalorder %s14, 1
    %p100 = por %p98, %p99
    %p101 = scmp.ne.s32.totalorder %s90, %s91
    %p102 = scmp.eq.s32.totalorder %s14, 0
    %p103 = por %p101, %p102
    %p104 = scmp.ne.s32.totalorder %s90, %s91
    %p105 = scmp.eq.s32.totalorder %s15, 1
    %p106 = por %p104, %p105
    %p108 = scmp.ne.s32.totalorder %s91, %s107
    %p109 = scmp.eq.s32.totalorder %s15, 0
    %p110 = por %p108, %p109
    %p111 = scmp.le.s32.totalorder 1, %s9
    %p112 = scmp.lt.s32.totalorder %s9, 3
    %p113 = pnand %p111, %p112
    %p114 = pneg %p113
    // Predicated region
    $region9: #{unet_forward.6} parent=5 // pred_check
      _
    $region10: #{unet_forward.6} parent=5 // pred_check_branch
      %116 = sbr.rel (%p113) target = $region12
    $region11: #{unet_forward.6} parent=5 // pred_region
      %s117 = ssub.s32 %s9, 1
      // Predicated region
      $region13: #{unet_forward.6} parent=11 // pred_check
        %p118 = pneg %p56
      $region14: #{unet_forward.6} parent=11 // pred_check_branch
        %120 = sbr.rel (%p118) target = $region16
      $region15: #{unet_forward.6} parent=11 // pred_region
        _
      $region16: #{unet_forward.6} parent=11 // pred_fallthru
        _
      // Predicated region
      $region17: #{unet_forward.6} parent=11 // pred_check
        %p121 = pneg %p77
      $region18: #{unet_forward.6} parent=11 // pred_check_branch
        %123 = sbr.rel (%p121) target = $region20
      $region19: #{unet_forward.6} parent=11 // pred_region
        _
      $region20: #{unet_forward.6} parent=11 // pred_fallthru
        _
    $region12: #{unet_forward.6} parent=5 // pred_fallthru
      _
    %p124 = scmp.lt.s32.totalorder %s9, 2
    // Predicated region
    $region21: #{unet_forward.6} parent=5 // pred_check
      %p125 = pneg %p124
    $region22: #{unet_forward.6} parent=5 // pred_check_branch
      %127 = sbr.rel (%p125) target = $region24
    $region23: #{unet_forward.6} parent=5 // pred_region
      // Predicated region
      $region25: #{unet_forward.6} parent=23 // pred_check
        %p128 = pneg %p29
      $region26: #{unet_forward.6} parent=23 // pred_check_branch
        %130 = sbr.rel (%p128) target = $region28
      $region27: #{unet_forward.6} parent=23 // pred_region
        %p131 = scmp.lt.s32.totalorder %s9, 1
        %s132 = scalar_select %p131, %s9, 1
        %s133 = smul.addr %s132, 8
        %s134 = smul.addr %s133, 4
        %s135 = scalar_lea.vmem %s0, %s134
      $region28: #{unet_forward.6} parent=23 // pred_fallthru
        _
    $region24: #{unet_forward.6} parent=5 // pred_fallthru
      _
    %p136 = scmp.le.s32.totalorder 1, %s9
    %p137 = scmp.lt.s32.totalorder %s9, 3
    %p138 = pnand %p136, %p137
    %p139 = pneg %p138
    // Predicated region
    $region29: #{unet_forward.6} parent=5 // pred_check
      _
    $region30: #{unet_forward.6} parent=5 // pred_check_branch
      %141 = sbr.rel (%p138) target = $region32
    $region31: #{unet_forward.6} parent=5 // pred_region
      %s142 = ssub.s32 %s9, 1
      %p143 = scmp.lt.s32.totalorder %s14, 1
      %s144 = scalar_select %p143, %s14, 1
      %s145 = smul.addr %s144, 8
      %s146 = smul.addr %s145, 4
      %s147 = scalar_lea.vmem %s0, %s146
      %p148 = pneg %p35
      %p149 = pneg %p32
      %p150 = pneg %p56
      %p151 = pneg %p53
      %p152 = pneg %p77
      %p153 = pneg %p74
      %p154 = pneg %p103
      %p155 = pneg %p100
      %p156 = scmp.lt.s32.totalorder %s14, 1
      %s157 = scalar_select %p156, %s14, 1
      %s158 = smul.addr %s157, 4
      %s159 = smul.addr %s158, 4
      %s160 = scalar_lea.vmem %s3, %s159
      %p161 = scmp.lt.s32.totalorder %s14, 1
      %s162 = scalar_select %p161, %s14, 1
      %s163 = smul.addr %s162, 8
      %s164 = smul.addr %s163, 4
      %s165 = scalar_lea.vmem %s0, %s164
      %p166 = scmp.lt.s32.totalorder %s14, 1
      %s167 = scalar_select %p166, %s14, 1
      %s168 = smul.addr %s167, 4
      %s169 = smul.addr %s168, 4
      %s170 = scalar_lea.vmem %s3, %s169
      %v172 = vld [vmem:[%s1] sm:$0xf]
      %v173 = vld [vmem:[%s1 + $0x4] sm:$0xf]
      %v174 = vld [vmem:[%s165] sm:$0xff]
      %v175 = vld [vmem:[%s165 + $0x8] sm:$0xff]
      %v176 = vld [vmem:[%s165 + $0x10] sm:$0xff]
      %v177 = vld [vmem:[%s165 + $0x18] sm:$0x33]
      %v178 = vld [vmem:[%s2] sm:$0xff]
      %v179 = vld [vmem:[%s2 + $0x8] sm:$0xff]
      %181 = vset.pattern.permute.xlu0 0
      %182 = vperm.xlu0 %181, %v178
      %v183 = vpop.permute.xlu0 %182
      %186 = vset.pattern.permute.xlu0 0
      %187 = vperm.xlu0 %186, %v179
      %v188 = vpop.permute.xlu0 %187
      %v192 = vunpack.c.l.b16 %v172
      %v193 = vunpack.c.l.b16 %v173
      %v194 = vpack.c.b16 %v193, %v192
      %v199 = vunpack.c.l.b16 %v174
      %v200 = vunpack.c.h.b16 %v174
      %v201 = vunpack.c.l.b16 %v175
      %v202 = vunpack.c.h.b16 %v175
      %v203 = vunpack.c.l.b16 %v176
      %v204 = vunpack.c.h.b16 %v176
      %v205 = vunpack.c.l.b16 %v177
      %v206 = vunpack.c.h.b16 %v177
      %v207 = vpack.c.b16 %v201, %v199
      %v208 = vpack.c.b16 %v202, %v200
      %v209 = vpack.c.b16 %v205, %v203
      %v210 = vpack.c.b16 %v206, %v204
      %vm213 = vcmask 220160
      %v215 = vsel %vm213, %v194, 0
      %vm217 = vcmask 1044480
      %vm218 = vcmask 1045504
      %v219 = vsel %vm217, 4294967295, 65535
      %v220 = vsel %vm218, %v219, 0
      %v222 = vand.u32 %v209, %v220
      %v225 = vand.u32 %v210, %v220
      %227 = vmatprep.subr.bf16.mxu0 0
      %228 = vmatpush1.bf16.msra.mxu0 0
      %229 = vmatprep.subr.bf16.mxu0 0
      %230 = vmatpush1.bf16.msra.mxu0 0
      %231 = vmatprep.subr.bf16.mxu0 0
      %232 = vmatpush1.bf16.msra.mxu0 0
      %233 = vmatprep.subr.bf16.mxu0 0
      %234 = vmatpush1.bf16.msra.mxu0 0
      %235 = vmatprep.subr.bf16.mxu0 0
      %236 = vmatpush1.bf16.msra.mxu0 0
      %237 = vmatprep.subr.bf16.mxu0 0
      %238 = vmatpush1.bf16.msra.mxu0 0
      %239 = vmatprep.subr.bf16.mxu0 %v225
      %240 = vmatpush1.bf16.msra.mxu0 %v222
      %241 = vmatprep.subr.bf16.mxu0 %v208
      %242 = vmatpush1.bf16.msra.mxu0 %v207
      %243 = vmatprep.subr.bf16.mxu0 0
      %244 = vmatpush2.bf16.msra.mxu0 0
      %245 = vmatprep.subr.bf16.mxu0 0
      %246 = vmatpush2.bf16.msra.mxu0 0
      %247 = vmatprep.subr.bf16.mxu0 0
      %248 = vmatpush2.bf16.msra.mxu0 0
      %249 = vmatprep.subr.bf16.mxu0 0
      %250 = vmatpush2.bf16.msra.mxu0 0
      %251 = vmatprep.subr.bf16.mxu0 0
      %252 = vmatpush2.bf16.msra.mxu0 0
      %253 = vmatprep.subr.bf16.mxu0 0
      %254 = vmatpush2.bf16.msra.mxu0 0
      %255 = vmatprep.subr.bf16.mxu0 0
      %256 = vmatpush2.bf16.msra.mxu0 0
      %257 = vmatprep.subr.bf16.mxu0 0
      %258 = vmatpush2.bf16.msra.mxu0 0
      %259 = vmatprep.mubr.bf16.mxu0 0
      %260 = vmatmul.mubr.bf16.gmra.mxu0 %v215
      %v261 = vpop.f32.mrf.mxu0
      %v262 = vadd.f32 %v183, %v261
      %v263 = vpop.f32.mrf.mxu0
      %v264 = vadd.f32 %v183, %v263
      %v265 = vpop.f32.mrf.mxu0
      %v266 = vadd.f32 %v188, %v265
      %v267 = vpop.f32.mrf.mxu0
      %v268 = vadd.f32 %v188, %v267
      %269 = vdwg.mxu0
      %v270 = vmax.f32 %v262, 0.0
      %v271 = vmax.f32 %v264, 0.0
      %v272 = vmax.f32 %v266, 0.0
      %v273 = vmax.f32 %v268, 0.0
      %v274 = vpack.c.bf16 %v272, %v270
      %v275 = vpack.c.bf16 %v273, %v271
      %v278 = vunpack.c.l.b16 %v274
      %v279 = vunpack.c.l.b16 %v275
      %v280 = vunpack.c.h.b16 %v274
      %v281 = vunpack.c.h.b16 %v275
      %v282 = vpack.c.b16 %v279, %v278
      %v283 = vpack.c.b16 %v281, %v280
      %286 = vst [vmem:[%s170] sm:$0xff] %v282
      %287 = vst [vmem:[%s170 + $0x8] sm:$0xff] %v283
      %p288 = scmp.lt.s32.totalorder %s14, 1
      %s289 = scalar_select %p288, %s14, 1
      %s290 = smul.addr %s289, 4
      %s291 = smul.addr %s290, 4
      %s292 = scalar_lea.vmem %s3, %s291
      // Predicated region
      $region33: #{unet_forward.6} parent=31 // pred_check
        %p293 = pneg %p100
      $region34: #{unet_forward.6} parent=31 // pred_check_branch
        %295 = sbr.rel (%p293) target = $region36
      $region35: #{unet_forward.6} parent=31 // pred_region
        _
      $region36: #{unet_forward.6} parent=31 // pred_fallthru
        _
    $region32: #{unet_forward.6} parent=5 // pred_fallthru
      _
    %p296 = scmp.le.s32.totalorder 2, %s9
    // Predicated region
    $region37: #{unet_forward.6} parent=5 // pred_check
      %p297 = pneg %p296
    $region38: #{unet_forward.6} parent=5 // pred_check_branch
      %299 = sbr.rel (%p297) target = $region40
    $region39: #{unet_forward.6} parent=5 // pred_region
      %s300 = ssub.s32 %s9, 2
      // Predicated region
      $region41: #{unet_forward.6} parent=39 // pred_check
        %p301 = pneg %p106
      $region42: #{unet_forward.6} parent=39 // pred_check_branch
        %303 = sbr.rel (%p301) target = $region44
      $region43: #{unet_forward.6} parent=39 // pred_region
        %p304 = scmp.lt.s32.totalorder %s15, 1
        %s305 = scalar_select %p304, %s15, 1
        %s306 = smul.addr %s305, 4
        %s307 = smul.addr %s306, 4
        %s308 = scalar_lea.vmem %s3, %s307
      $region44: #{unet_forward.6} parent=39 // pred_fallthru
        _
    $region40: #{unet_forward.6} parent=5 // pred_fallthru
      _
  $region6: #{unet_forward.6} parent=0 // loop_footer
    %s13 = sadd.s32 1, %s9
  $region7: #{unet_forward.6} parent=0 // loop_footer_branch
    %8 = sbr.rel target = $region3
  $region8: #{unet_forward.6} parent=0 // loop_exit
    _

// kernel: unet_forward.7
$region0: #{unet_forward.7}
  #allocation0 [shape = 'u32[]', space=smem, size = 0x4, offset = 0x4, fixed_abs, tag = 'smem constant byte address 0x4 - core index']
  #allocation1 [shape = 'u32[144,128]{1,0:T(1,128)}', space=vmem, size = 0x12000, scoped, tag = 'internal scratch']
  %s0 = inlined_call_operand.vmem [shape: bf16[2,144,64], index: 0, kind: input, shape index: {}]
  %s1 = inlined_call_operand.vmem [shape: bf16[32,144], index: 1, kind: input, shape index: {}]
  %s2 = inlined_call_operand.vmem [shape: f32[32,1], index: 2, kind: input, shape index: {}]
  %s3 = inlined_call_operand.vmem [shape: bf16[2,32,64], index: 3, kind: output, shape index: {}]
  %s4 = sld [smem:[#allocation0]]
  $region45: #{unet_forward.7} parent=0
    _
  %s6 = ssub.s32 1, %s4
  %s7 = scalar_select 0, %s6, %s4
  loop: start=0, step=1, limit=4
  $region2: #{unet_forward.7} parent=0 // loop_pre_header
    _
  $region3: #{unet_forward.7} parent=0 // loop_header
    %s9 = sphi 0, %s13
    %p10 = scmp.ge.s32.totalorder %s9, 4
    %s19 = sphi 0, %s21
    %s22 = sphi 0, %s19
    %s23 = sphi 0, %s22
    %s39 = sphi 0, %s23
    %s43 = sphi 0, %s43
    %s45 = sphi 0, %s43
    %s46 = sphi 0, %s45
    %s60 = sphi 0, %s46
    %s64 = sphi 0, %s64
    %s66 = sphi 0, %s64
    %s67 = sphi 0, %s66
    %s81 = sphi 0, %s67
    %s87 = sphi 0, %s89
    %s90 = sphi 0, %s87
    %s91 = sphi 0, %s90
    %s107 = sphi 0, %s91
  $region4: #{unet_forward.7} parent=0 // loop_header_branch
    %12 = sbr.rel (%p10) target = $region8
  $region5: #{unet_forward.7} parent=0 // loop_body
    %s14 = ssub.s32 %s9, 1
    %s15 = ssub.s32 %s9, 2
    %s16 = sadd.s32 %s9, 1
    %s17 = ssub.s32 %s9, %s16
    %p18 = scmp.eq.s32.totalorder %s17, 0
    %s20 = sadd.s32 %s19, 1
    %s21 = scalar_select %p18, %s19, %s20
    %p24 = pneg %p18
    %p25 = scmp.eq.s32.totalorder %s9, 1
    %p26 = por %p24, %p25
    %p27 = scmp.ne.s32.totalorder %s19, %s22
    %p28 = scmp.eq.s32.totalorder %s9, 0
    %p29 = por %p27, %p28
    %p30 = scmp.ne.s32.totalorder %s19, %s22
    %p31 = scmp.eq.s32.totalorder %s14, 1
    %p32 = por %p30, %p31
    %p33 = scmp.ne.s32.totalorder %s22, %s23
    %p34 = scmp.eq.s32.totalorder %s14, 0
    %p35 = por %p33, %p34
    %p36 = scmp.ne.s32.totalorder %s22, %s23
    %p37 = scmp.eq.s32.totalorder %s15, 1
    %p38 = por %p36, %p37
    %p40 = scmp.ne.s32.totalorder %s23, %s39
    %p41 = scmp.eq.s32.totalorder %s15, 0
    %p42 = por %p40, %p41
    %s44 = sadd.s32 %s43, 1
    %p47 = scmp.eq.s32.totalorder %s9, 1
    %p48 = scmp.ne.s32.totalorder %s43, %s45
    %p49 = scmp.eq.s32.totalorder %s9, 0
    %p50 = por %p48, %p49
    %p51 = scmp.ne.s32.totalorder %s43, %s45
    %p52 = scmp.eq.s32.totalorder %s14, 1
    %p53 = por %p51, %p52
    %p54 = scmp.ne.s32.totalorder %s45, %s46
    %p55 = scmp.eq.s32.totalorder %s14, 0
    %p56 = por %p54, %p55
    %p57 = scmp.ne.s32.totalorder %s45, %s46
    %p58 = scmp.eq.s32.totalorder %s15, 1
    %p59 = por %p57, %p58
    %p61 = scmp.ne.s32.totalorder %s46, %s60
    %p62 = scmp.eq.s32.totalorder %s15, 0
    %p63 = por %p61, %p62
    %s65 = sadd.s32 %s64, 1
    %p68 = scmp.eq.s32.totalorder %s9, 1
    %p69 = scmp.ne.s32.totalorder %s64, %s66
    %p70 = scmp.eq.s32.totalorder %s9, 0
    %p71 = por %p69, %p70
    %p72 = scmp.ne.s32.totalorder %s64, %s66
    %p73 = scmp.eq.s32.totalorder %s14, 1
    %p74 = por %p72, %p73
    %p75 = scmp.ne.s32.totalorder %s66, %s67
    %p76 = scmp.eq.s32.totalorder %s14, 0
    %p77 = por %p75, %p76
    %p78 = scmp.ne.s32.totalorder %s66, %s67
    %p79 = scmp.eq.s32.totalorder %s15, 1
    %p80 = por %p78, %p79
    %p82 = scmp.ne.s32.totalorder %s67, %s81
    %p83 = scmp.eq.s32.totalorder %s15, 0
    %p84 = por %p82, %p83
    %s85 = ssub.s32 %s9, %s16
    %p86 = scmp.eq.s32.totalorder %s85, 0
    %s88 = sadd.s32 %s87, 1
    %s89 = scalar_select %p86, %s87, %s88
    %p92 = pneg %p86
    %p93 = scmp.eq.s32.totalorder %s9, 1
    %p94 = por %p92, %p93
    %p95 = scmp.ne.s32.totalorder %s87, %s90
    %p96 = scmp.eq.s32.totalorder %s9, 0
    %p97 = por %p95, %p96
    %p98 = scmp.ne.s32.totalorder %s87, %s90
    %p99 = scmp.eq.s32.totalorder %s14, 1
    %p100 = por %p98, %p99
    %p101 = scmp.ne.s32.totalorder %s90, %s91
    %p102 = scmp.eq.s32.totalorder %s14, 0
    %p103 = por %p101, %p102
    %p104 = scmp.ne.s32.totalorder %s90, %s91
    %p105 = scmp.eq.s32.totalorder %s15, 1
    %p106 = por %p104, %p105
    %p108 = scmp.ne.s32.totalorder %s91, %s107
    %p109 = scmp.eq.s32.totalorder %s15, 0
    %p110 = por %p108, %p109
    %p111 = scmp.le.s32.totalorder 1, %s9
    %p112 = scmp.lt.s32.totalorder %s9, 3
    %p113 = pnand %p111, %p112
    %p114 = pneg %p113
    // Predicated region
    $region9: #{unet_forward.7} parent=5 // pred_check
      _
    $region10: #{unet_forward.7} parent=5 // pred_check_branch
      %116 = sbr.rel (%p113) target = $region12
    $region11: #{unet_forward.7} parent=5 // pred_region
      %s117 = ssub.s32 %s9, 1
      // Predicated region
      $region13: #{unet_forward.7} parent=11 // pred_check
        %p118 = pneg %p56
      $region14: #{unet_forward.7} parent=11 // pred_check_branch
        %120 = sbr.rel (%p118) target = $region16
      $region15: #{unet_forward.7} parent=11 // pred_region
        _
      $region16: #{unet_forward.7} parent=11 // pred_fallthru
        _
      // Predicated region
      $region17: #{unet_forward.7} parent=11 // pred_check
        %p121 = pneg %p77
      $region18: #{unet_forward.7} parent=11 // pred_check_branch
        %123 = sbr.rel (%p121) target = $region20
      $region19: #{unet_forward.7} parent=11 // pred_region
        _
      $region20: #{unet_forward.7} parent=11 // pred_fallthru
        _
    $region12: #{unet_forward.7} parent=5 // pred_fallthru
      _
    %p124 = scmp.lt.s32.totalorder %s9, 2
    // Predicated region
    $region21: #{unet_forward.7} parent=5 // pred_check
      %p125 = pneg %p124
    $region22: #{unet_forward.7} parent=5 // pred_check_branch
      %127 = sbr.rel (%p125) target = $region24
    $region23: #{unet_forward.7} parent=5 // pred_region
      // Predicated region
      $region25: #{unet_forward.7} parent=23 // pred_check
        %p128 = pneg %p29
      $region26: #{unet_forward.7} parent=23 // pred_check_branch
        %130 = sbr.rel (%p128) target = $region28
      $region27: #{unet_forward.7} parent=23 // pred_region
        %p131 = scmp.lt.s32.totalorder %s9, 1
        %s132 = scalar_select %p131, %s9, 1
        %s133 = smul.addr %s132, 18
        %s134 = smul.addr %s133, 4
        %s135 = scalar_lea.vmem %s0, %s134
      $region28: #{unet_forward.7} parent=23 // pred_fallthru
        _
    $region24: #{unet_forward.7} parent=5 // pred_fallthru
      _
    %p136 = scmp.le.s32.totalorder 1, %s9
    %p137 = scmp.lt.s32.totalorder %s9, 3
    %p138 = pnand %p136, %p137
    %p139 = pneg %p138
    // Predicated region
    $region29: #{unet_forward.7} parent=5 // pred_check
      _
    $region30: #{unet_forward.7} parent=5 // pred_check_branch
      %141 = sbr.rel (%p138) target = $region32
    $region31: #{unet_forward.7} parent=5 // pred_region
      %s142 = ssub.s32 %s9, 1
      %p143 = scmp.lt.s32.totalorder %s14, 1
      %s144 = scalar_select %p143, %s14, 1
      %s145 = smul.addr %s144, 18
      %s146 = smul.addr %s145, 4
      %s147 = scalar_lea.vmem %s0, %s146
      %p148 = pneg %p35
      %p149 = pneg %p32
      %p150 = pneg %p56
      %p151 = pneg %p53
      %p152 = pneg %p77
      %p153 = pneg %p74
      %p154 = pneg %p103
      %p155 = pneg %p100
      %p156 = scmp.lt.s32.totalorder %s14, 1
      %s157 = scalar_select %p156, %s14, 1
      %s158 = smul.addr %s157, 4
      %s159 = smul.addr %s158, 4
      %s160 = scalar_lea.vmem %s3, %s159
      %p161 = scmp.lt.s32.totalorder %s14, 1
      %s162 = scalar_select %p161, %s14, 1
      %s163 = smul.addr %s162, 18
      %s164 = smul.addr %s163, 4
      %s165 = scalar_lea.vmem %s0, %s164
      %p166 = scmp.lt.s32.totalorder %s14, 1
      %s167 = scalar_select %p166, %s14, 1
      %s168 = smul.addr %s167, 4
      %s169 = smul.addr %s168, 4
      %s170 = scalar_lea.vmem %s3, %s169
      %v172 = vld [vmem:[%s1] sm:$0xff]
      %v173 = vld [vmem:[%s1 + $0x8] sm:$0xff]
      %v174 = vld [vmem:[%s1 + $0x10] sm:$0xff]
      %v175 = vld [vmem:[%s1 + $0x18] sm:$0xff]
      %v176 = vld [vmem:[%s165] sm:$0xf]
      %v177 = vld [vmem:[%s165 + $0x4] sm:$0xf]
      %v178 = vld [vmem:[%s165 + $0x8] sm:$0xf]
      %v179 = vld [vmem:[%s165 + $0xc] sm:$0xf]
      %v180 = vld [vmem:[%s165 + $0x10] sm:$0xf]
      %v181 = vld [vmem:[%s165 + $0x14] sm:$0xf]
      %v182 = vld [vmem:[%s165 + $0x18] sm:$0xf]
      %v183 = vld [vmem:[%s165 + $0x1c] sm:$0xf]
      %v184 = vld [vmem:[%s165 + $0x20] sm:$0xf]
      %v185 = vld [vmem:[%s165 + $0x24] sm:$0xf]
      %v186 = vld [vmem:[%s165 + $0x28] sm:$0xf]
      %v187 = vld [vmem:[%s165 + $0x2c] sm:$0xf]
      %v188 = vld [vmem:[%s165 + $0x30] sm:$0xf]
      %v189 = vld [vmem:[%s165 + $0x34] sm:$0xf]
      %v190 = vld [vmem:[%s165 + $0x38] sm:$0xf]
      %v191 = vld [vmem:[%s165 + $0x3c] sm:$0xf]
      %v192 = vld [vmem:[%s165 + $0x40] sm:$0xf]
      %v193 = vld [vmem:[%s165 + $0x44] sm:$0xf]
      %v194 = vld [vmem:[%s2] sm:$0xff]
      %v195 = vld [vmem:[%s2 + $0x8] sm:$0xff]
      %v196 = vld [vmem:[%s2 + $0x10] sm:$0xff]
      %v197 = vld [vmem:[%s2 + $0x18] sm:$0xff]
      %199 = vset.pattern.permute.xlu0 0
      %200 = vperm.xlu0 %199, %v194
      %v201 = vpop.permute.xlu0 %200
      %204 = vset.pattern.permute.xlu0 0
      %205 = vperm.xlu0 %204, %v195
      %v206 = vpop.permute.xlu0 %205
      %209 = vset.pattern.permute.xlu0 0
      %210 = vperm.xlu0 %209, %v196
      %v211 = vpop.permute.xlu0 %210
      %214 = vset.pattern.permute.xlu0 0
      %215 = vperm.xlu0 %214, %v197
      %v216 = vpop.permute.xlu0 %215
      %v222 = vunpack.c.l.b16 %v172
      %v223 = vunpack.c.h.b16 %v172
      %v224 = vunpack.c.l.b16 %v173
      %v225 = vunpack.c.h.b16 %v173
      %v226 = vunpack.c.l.b16 %v174
      %v227 = vunpack.c.h.b16 %v174
      %v228 = vunpack.c.l.b16 %v175
      %v229 = vunpack.c.h.b16 %v175
      %v230 = vpack.c.b16 %v224, %v222
      %v231 = vpack.c.b16 %v225, %v223
      %v232 = vpack.c.b16 %v228, %v226
      %v233 = vpack.c.b16 %v229, %v227
      %v254 = vunpack.c.l.b16 %v176
      %v255 = vunpack.c.l.b16 %v177
      %v256 = vunpack.c.l.b16 %v178
      %v257 = vunpack.c.l.b16 %v179
      %v258 = vunpack.c.l.b16 %v180
      %v259 = vunpack.c.l.b16 %v181
      %v260 = vunpack.c.l.b16 %v182
      %v261 = vunpack.c.l.b16 %v183
      %v262 = vunpack.c.l.b16 %v184
      %v263 = vunpack.c.l.b16 %v185
      %v264 = vunpack.c.l.b16 %v186
      %v265 = vunpack.c.l.b16 %v187
      %v266 = vunpack.c.l.b16 %v188
      %v267 = vunpack.c.l.b16 %v189
      %v268 = vunpack.c.l.b16 %v190
      %v269 = vunpack.c.l.b16 %v191
      %v270 = vunpack.c.l.b16 %v192
      %v271 = vunpack.c.l.b16 %v193
      %v272 = vpack.c.b16 %v255, %v254
      %v273 = vpack.c.b16 %v257, %v256
      %v274 = vpack.c.b16 %v259, %v258
      %v275 = vpack.c.b16 %v261, %v260
      %v276 = vpack.c.b16 %v263, %v262
      %v277 = vpack.c.b16 %v265, %v264
      %v278 = vpack.c.b16 %v267, %v266
      %v279 = vpack.c.b16 %v269, %v268
      %v280 = vpack.c.b16 %v271, %v270
      %vm290 = vcmask 130048
      %v292 = vsel %vm290, %v231, 0
      %v295 = vsel %vm290, %v233, 0
      %297 = vmatprep.subr.bf16.mxu0 0
      %298 = vmatpush1.bf16.msra.mxu0 %v279
      %299 = vmatprep.subr.bf16.mxu0 0
      %300 = vmatpush1.bf16.msra.mxu0 %v278
      %301 = vmatprep.subr.bf16.mxu0 0
      %302 = vmatpush1.bf16.msra.mxu0 %v277
      %303 = vmatprep.subr.bf16.mxu0 0
      %304 = vmatpush1.bf16.msra.mxu0 %v276
      %305 = vmatprep.subr.bf16.mxu0 0
      %306 = vmatpush1.bf16.msra.mxu0 %v275
      %307 = vmatprep.subr.bf16.mxu0 0
      %308 = vmatpush1.bf16.msra.mxu0 %v274
      %309 = vmatprep.subr.bf16.mxu0 0
      %310 = vmatpush1.bf16.msra.mxu0 %v273
      %311 = vmatprep.subr.bf16.mxu0 0
      %312 = vmatpush1.bf16.msra.mxu0 %v272
      %313 = vmatprep.subr.bf16.mxu0 0
      %314 = vmatpush2.bf16.msra.mxu0 0
      %315 = vmatprep.subr.bf16.mxu0 0
      %316 = vmatpush2.bf16.msra.mxu0 0
      %317 = vmatprep.subr.bf16.mxu0 0
      %318 = vmatpush2.bf16.msra.mxu0 0
      %319 = vmatprep.subr.bf16.mxu0 0
      %320 = vmatpush2.bf16.msra.mxu0 0
      %321 = vmatprep.subr.bf16.mxu0 0
      %322 = vmatpush2.bf16.msra.mxu0 0
      %323 = vmatprep.subr.bf16.mxu0 0
      %324 = vmatpush2.bf16.msra.mxu0 0
      %325 = vmatprep.subr.bf16.mxu0 0
      %326 = vmatpush2.bf16.msra.mxu0 0
      %327 = vmatprep.subr.bf16.mxu0 0
      %328 = vmatpush2.bf16.msra.mxu0 %v280
      %329 = vmatprep.mubr.bf16.mxu0 %v292
      %330 = vmatmul.mubr.bf16.gmra.mxu0 %v230
      %v331 = vpop.f32.mrf.mxu0
      %v332 = vadd.f32 %v201, %v331
      %v333 = vpop.f32.mrf.mxu0
      %v334 = vpop.f32.mrf.mxu0
      %v335 = vadd.f32 %v206, %v334
      %v336 = vpop.f32.mrf.mxu0
      %337 = vmatprep.mubr.bf16.mxu0 %v295
      %338 = vmatmul.mubr.bf16.gmra.mxu0 %v232
      %v339 = vpop.f32.mrf.mxu0
      %v340 = vadd.f32 %v211, %v339
      %v341 = vpop.f32.mrf.mxu0
      %v342 = vpop.f32.mrf.mxu0
      %v343 = vadd.f32 %v216, %v342
      %v344 = vpop.f32.mrf.mxu0
      %345 = vdwg.mxu0
      %v346 = vmax.f32 %v332, 0.0
      %v347 = vmax.f32 %v335, 0.0
      %v348 = vmax.f32 %v340, 0.0
      %v349 = vmax.f32 %v343, 0.0
      %v350 = vpack.c.bf16 %v347, %v346
      %v351 = vpack.c.bf16 %v349, %v348
      %v354 = vunpack.c.l.b16 %v350
      %v355 = vunpack.c.h.b16 %v350
      %v356 = vunpack.c.l.b16 %v351
      %v357 = vunpack.c.h.b16 %v351
      %v358 = vpack.c.b16 %v354, %v354
      %v359 = vpack.c.b16 %v355, %v355
      %v360 = vpack.c.b16 %v356, %v356
      %v361 = vpack.c.b16 %v357, %v357
      %vm366 = vcmask 519168
      %367 = vst.msk [vmem:[%s170] sm:$0xf] %vm366, %v358
      %368 = vst.msk [vmem:[%s170 + $0x4] sm:$0xf] %vm366, %v359
      %369 = vst.msk [vmem:[%s170 + $0x8] sm:$0xf] %vm366, %v360
      %370 = vst.msk [vmem:[%s170 + $0xc] sm:$0xf] %vm366, %v361
      %p371 = scmp.lt.s32.totalorder %s14, 1
      %s372 = scalar_select %p371, %s14, 1
      %s373 = smul.addr %s372, 4
      %s374 = smul.addr %s373, 4
      %s375 = scalar_lea.vmem %s3, %s374
      // Predicated region
      $region33: #{unet_forward.7} parent=31 // pred_check
        %p376 = pneg %p100
      $region34: #{unet_forward.7} parent=31 // pred_check_branch
        %378 = sbr.rel (%p376) target = $region36
      $region35: #{unet_forward.7} parent=31 // pred_region
        _
      $region36: #{unet_forward.7} parent=31 // pred_fallthru
        _
    $region32: #{unet_forward.7} parent=5 // pred_fallthru
      _
    %p379 = scmp.le.s32.totalorder 2, %s9
    // Predicated region
    $region37: #{unet_forward.7} parent=5 // pred_check
      %p380 = pneg %p379
    $region38: #{unet_forward.7} parent=5 // pred_check_branch
      %382 = sbr.rel (%p380) target = $region40
    $region39: #{unet_forward.7} parent=5 // pred_region
      %s383 = ssub.s32 %s9, 2
      // Predicated region
      $region41: #{unet_forward.7} parent=39 // pred_check
        %p384 = pneg %p106
      $region42: #{unet_forward.7} parent=39 // pred_check_branch
        %386 = sbr.rel (%p384) target = $region44
      $region43: #{unet_forward.7} parent=39 // pred_region
        %p387 = scmp.lt.s32.totalorder %s15, 1
        %s388 = scalar_select %p387, %s15, 1
        %s389 = smul.addr %s388, 4
        %s390 = smul.addr %s389, 4
        %s391 = scalar_lea.vmem %s3, %s390
      $region44: #{unet_forward.7} parent=39 // pred_fallthru
        _
    $region40: #{unet_forward.7} parent=5 // pred_fallthru
      _
  $region6: #{unet_forward.7} parent=0 // loop_footer
    %s13 = sadd.s32 1, %s9
  $region7: #{unet_forward.7} parent=0 // loop_footer_branch
    %8 = sbr.rel target = $region3
  $region8: #{unet_forward.7} parent=0 // loop_exit
    _

// kernel: unet_forward.8
$region0: #{unet_forward.8}
  #allocation0 [shape = 'u32[]', space=smem, size = 0x4, offset = 0x4, fixed_abs, tag = 'smem constant byte address 0x4 - core index']
  #allocation1 [shape = 'u32[144,128]{1,0:T(1,128)}', space=vmem, size = 0x12000, scoped, tag = 'internal scratch']
  %s0 = inlined_call_operand.vmem [shape: bf16[2,288,16], index: 0, kind: input, shape index: {}]
  %s1 = inlined_call_operand.vmem [shape: bf16[32,288], index: 1, kind: input, shape index: {}]
  %s2 = inlined_call_operand.vmem [shape: f32[32,1], index: 2, kind: input, shape index: {}]
  %s3 = inlined_call_operand.vmem [shape: bf16[2,32,16], index: 3, kind: output, shape index: {}]
  %s4 = sld [smem:[#allocation0]]
  $region45: #{unet_forward.8} parent=0
    _
  %s6 = ssub.s32 1, %s4
  %s7 = scalar_select 0, %s6, %s4
  loop: start=0, step=1, limit=4
  $region2: #{unet_forward.8} parent=0 // loop_pre_header
    _
  $region3: #{unet_forward.8} parent=0 // loop_header
    %s9 = sphi 0, %s13
    %p10 = scmp.ge.s32.totalorder %s9, 4
    %s19 = sphi 0, %s21
    %s22 = sphi 0, %s19
    %s23 = sphi 0, %s22
    %s39 = sphi 0, %s23
    %s43 = sphi 0, %s43
    %s45 = sphi 0, %s43
    %s46 = sphi 0, %s45
    %s60 = sphi 0, %s46
    %s64 = sphi 0, %s64
    %s66 = sphi 0, %s64
    %s67 = sphi 0, %s66
    %s81 = sphi 0, %s67
    %s87 = sphi 0, %s89
    %s90 = sphi 0, %s87
    %s91 = sphi 0, %s90
    %s107 = sphi 0, %s91
  $region4: #{unet_forward.8} parent=0 // loop_header_branch
    %12 = sbr.rel (%p10) target = $region8
  $region5: #{unet_forward.8} parent=0 // loop_body
    %s14 = ssub.s32 %s9, 1
    %s15 = ssub.s32 %s9, 2
    %s16 = sadd.s32 %s9, 1
    %s17 = ssub.s32 %s9, %s16
    %p18 = scmp.eq.s32.totalorder %s17, 0
    %s20 = sadd.s32 %s19, 1
    %s21 = scalar_select %p18, %s19, %s20
    %p24 = pneg %p18
    %p25 = scmp.eq.s32.totalorder %s9, 1
    %p26 = por %p24, %p25
    %p27 = scmp.ne.s32.totalorder %s19, %s22
    %p28 = scmp.eq.s32.totalorder %s9, 0
    %p29 = por %p27, %p28
    %p30 = scmp.ne.s32.totalorder %s19, %s22
    %p31 = scmp.eq.s32.totalorder %s14, 1
    %p32 = por %p30, %p31
    %p33 = scmp.ne.s32.totalorder %s22, %s23
    %p34 = scmp.eq.s32.totalorder %s14, 0
    %p35 = por %p33, %p34
    %p36 = scmp.ne.s32.totalorder %s22, %s23
    %p37 = scmp.eq.s32.totalorder %s15, 1
    %p38 = por %p36, %p37
    %p40 = scmp.ne.s32.totalorder %s23, %s39
    %p41 = scmp.eq.s32.totalorder %s15, 0
    %p42 = por %p40, %p41
    %s44 = sadd.s32 %s43, 1
    %p47 = scmp.eq.s32.totalorder %s9, 1
    %p48 = scmp.ne.s32.totalorder %s43, %s45
    %p49 = scmp.eq.s32.totalorder %s9, 0
    %p50 = por %p48, %p49
    %p51 = scmp.ne.s32.totalorder %s43, %s45
    %p52 = scmp.eq.s32.totalorder %s14, 1
    %p53 = por %p51, %p52
    %p54 = scmp.ne.s32.totalorder %s45, %s46
    %p55 = scmp.eq.s32.totalorder %s14, 0
    %p56 = por %p54, %p55
    %p57 = scmp.ne.s32.totalorder %s45, %s46
    %p58 = scmp.eq.s32.totalorder %s15, 1
    %p59 = por %p57, %p58
    %p61 = scmp.ne.s32.totalorder %s46, %s60
    %p62 = scmp.eq.s32.totalorder %s15, 0
    %p63 = por %p61, %p62
    %s65 = sadd.s32 %s64, 1
    %p68 = scmp.eq.s32.totalorder %s9, 1
    %p69 = scmp.ne.s32.totalorder %s64, %s66
    %p70 = scmp.eq.s32.totalorder %s9, 0
    %p71 = por %p69, %p70
    %p72 = scmp.ne.s32.totalorder %s64, %s66
    %p73 = scmp.eq.s32.totalorder %s14, 1
    %p74 = por %p72, %p73
    %p75 = scmp.ne.s32.totalorder %s66, %s67
    %p76 = scmp.eq.s32.totalorder %s14, 0
    %p77 = por %p75, %p76
    %p78 = scmp.ne.s32.totalorder %s66, %s67
    %p79 = scmp.eq.s32.totalorder %s15, 1
    %p80 = por %p78, %p79
    %p82 = scmp.ne.s32.totalorder %s67, %s81
    %p83 = scmp.eq.s32.totalorder %s15, 0
    %p84 = por %p82, %p83
    %s85 = ssub.s32 %s9, %s16
    %p86 = scmp.eq.s32.totalorder %s85, 0
    %s88 = sadd.s32 %s87, 1
    %s89 = scalar_select %p86, %s87, %s88
    %p92 = pneg %p86
    %p93 = scmp.eq.s32.totalorder %s9, 1
    %p94 = por %p92, %p93
    %p95 = scmp.ne.s32.totalorder %s87, %s90
    %p96 = scmp.eq.s32.totalorder %s9, 0
    %p97 = por %p95, %p96
    %p98 = scmp.ne.s32.totalorder %s87, %s90
    %p99 = scmp.eq.s32.totalorder %s14, 1
    %p100 = por %p98, %p99
    %p101 = scmp.ne.s32.totalorder %s90, %s91
    %p102 = scmp.eq.s32.totalorder %s14, 0
    %p103 = por %p101, %p102
    %p104 = scmp.ne.s32.totalorder %s90, %s91
    %p105 = scmp.eq.s32.totalorder %s15, 1
    %p106 = por %p104, %p105
    %p108 = scmp.ne.s32.totalorder %s91, %s107
    %p109 = scmp.eq.s32.totalorder %s15, 0
    %p110 = por %p108, %p109
    %p111 = scmp.le.s32.totalorder 1, %s9
    %p112 = scmp.lt.s32.totalorder %s9, 3
    %p113 = pnand %p111, %p112
    %p114 = pneg %p113
    // Predicated region
    $region9: #{unet_forward.8} parent=5 // pred_check
      _
    $region10: #{unet_forward.8} parent=5 // pred_check_branch
      %116 = sbr.rel (%p113) target = $region12
    $region11: #{unet_forward.8} parent=5 // pred_region
      %s117 = ssub.s32 %s9, 1
      // Predicated region
      $region13: #{unet_forward.8} parent=11 // pred_check
        %p118 = pneg %p56
      $region14: #{unet_forward.8} parent=11 // pred_check_branch
        %120 = sbr.rel (%p118) target = $region16
      $region15: #{unet_forward.8} parent=11 // pred_region
        _
      $region16: #{unet_forward.8} parent=11 // pred_fallthru
        _
      // Predicated region
      $region17: #{unet_forward.8} parent=11 // pred_check
        %p121 = pneg %p77
      $region18: #{unet_forward.8} parent=11 // pred_check_branch
        %123 = sbr.rel (%p121) target = $region20
      $region19: #{unet_forward.8} parent=11 // pred_region
        _
      $region20: #{unet_forward.8} parent=11 // pred_fallthru
        _
    $region12: #{unet_forward.8} parent=5 // pred_fallthru
      _
    %p124 = scmp.lt.s32.totalorder %s9, 2
    // Predicated region
    $region21: #{unet_forward.8} parent=5 // pred_check
      %p125 = pneg %p124
    $region22: #{unet_forward.8} parent=5 // pred_check_branch
      %127 = sbr.rel (%p125) target = $region24
    $region23: #{unet_forward.8} parent=5 // pred_region
      // Predicated region
      $region25: #{unet_forward.8} parent=23 // pred_check
        %p128 = pneg %p29
      $region26: #{unet_forward.8} parent=23 // pred_check_branch
        %130 = sbr.rel (%p128) target = $region28
      $region27: #{unet_forward.8} parent=23 // pred_region
        %p131 = scmp.lt.s32.totalorder %s9, 1
        %s132 = scalar_select %p131, %s9, 1
        %s133 = smul.addr %s132, 36
        %s134 = smul.addr %s133, 4
        %s135 = scalar_lea.vmem %s0, %s134
      $region28: #{unet_forward.8} parent=23 // pred_fallthru
        _
    $region24: #{unet_forward.8} parent=5 // pred_fallthru
      _
    %p136 = scmp.le.s32.totalorder 1, %s9
    %p137 = scmp.lt.s32.totalorder %s9, 3
    %p138 = pnand %p136, %p137
    %p139 = pneg %p138
    // Predicated region
    $region29: #{unet_forward.8} parent=5 // pred_check
      _
    $region30: #{unet_forward.8} parent=5 // pred_check_branch
      %141 = sbr.rel (%p138) target = $region32
    $region31: #{unet_forward.8} parent=5 // pred_region
      %s142 = ssub.s32 %s9, 1
      %p143 = scmp.lt.s32.totalorder %s14, 1
      %s144 = scalar_select %p143, %s14, 1
      %s145 = smul.addr %s144, 36
      %s146 = smul.addr %s145, 4
      %s147 = scalar_lea.vmem %s0, %s146
      %p148 = pneg %p35
      %p149 = pneg %p32
      %p150 = pneg %p56
      %p151 = pneg %p53
      %p152 = pneg %p77
      %p153 = pneg %p74
      %p154 = pneg %p103
      %p155 = pneg %p100
      %p156 = scmp.lt.s32.totalorder %s14, 1
      %s157 = scalar_select %p156, %s14, 1
      %s158 = smul.addr %s157, 4
      %s159 = smul.addr %s158, 4
      %s160 = scalar_lea.vmem %s3, %s159
      %p161 = scmp.lt.s32.totalorder %s14, 1
      %s162 = scalar_select %p161, %s14, 1
      %s163 = smul.addr %s162, 36
      %s164 = smul.addr %s163, 4
      %s165 = scalar_lea.vmem %s0, %s164
      %p166 = scmp.lt.s32.totalorder %s14, 1
      %s167 = scalar_select %p166, %s14, 1
      %s168 = smul.addr %s167, 4
      %s169 = smul.addr %s168, 4
      %s170 = scalar_lea.vmem %s3, %s169
      %v172 = vld [vmem:[%s1] sm:$0xff]
      %v173 = vld [vmem:[%s1 + $0x8] sm:$0xf]
      %v174 = vld [vmem:[%s1 + $0xc] sm:$0xff]
      %v175 = vld [vmem:[%s1 + $0x14] sm:$0xf]
      %v176 = vld [vmem:[%s1 + $0x18] sm:$0xff]
      %v177 = vld [vmem:[%s1 + $0x20] sm:$0xf]
      %v178 = vld [vmem:[%s1 + $0x24] sm:$0xff]
      %v179 = vld [vmem:[%s1 + $0x2c] sm:$0xf]
      %v180 = vld [vmem:[%s165] sm:$0xf]
      %v181 = vld [vmem:[%s165 + $0x4] sm:$0xf]
      %v182 = vld [vmem:[%s165 + $0x8] sm:$0xf]
      %v183 = vld [vmem:[%s165 + $0xc] sm:$0xf]
      %v184 = vld [vmem:[%s165 + $0x10] sm:$0xf]
      %v185 = vld [vmem:[%s165 + $0x14] sm:$0xf]
      %v186 = vld [vmem:[%s165 + $0x18] sm:$0xf]
      %v187 = vld [vmem:[%s165 + $0x1c] sm:$0xf]
      %v188 = vld [vmem:[%s165 + $0x20] sm:$0xf]
      %v189 = vld [vmem:[%s165 + $0x24] sm:$0xf]
      %v190 = vld [vmem:[%s165 + $0x28] sm:$0xf]
      %v191 = vld [vmem:[%s165 + $0x2c] sm:$0xf]
      %v192 = vld [vmem:[%s165 + $0x30] sm:$0xf]
      %v193 = vld [vmem:[%s165 + $0x34] sm:$0xf]
      %v194 = vld [vmem:[%s165 + $0x38] sm:$0xf]
      %v195 = vld [vmem:[%s165 + $0x3c] sm:$0xf]
      %v196 = vld [vmem:[%s165 + $0x40] sm:$0xf]
      %v197 = vld [vmem:[%s165 + $0x44] sm:$0xf]
      %v198 = vld [vmem:[%s165 + $0x48] sm:$0xf]
      %v199 = vld [vmem:[%s165 + $0x4c] sm:$0xf]
      %v200 = vld [vmem:[%s165 + $0x50] sm:$0xf]
      %v201 = vld [vmem:[%s165 + $0x54] sm:$0xf]
      %v202 = vld [vmem:[%s165 + $0x58] sm:$0xf]
      %v203 = vld [vmem:[%s165 + $0x5c] sm:$0xf]
      %v204 = vld [vmem:[%s165 + $0x60] sm:$0xf]
      %v205 = vld [vmem:[%s165 + $0x64] sm:$0xf]
      %v206 = vld [vmem:[%s165 + $0x68] sm:$0xf]
      %v207 = vld [vmem:[%s165 + $0x6c] sm:$0xf]
      %v208 = vld [vmem:[%s165 + $0x70] sm:$0xf]
      %v209 = vld [vmem:[%s165 + $0x74] sm:$0xf]
      %v210 = vld [vmem:[%s165 + $0x78] sm:$0xf]
      %v211 = vld [vmem:[%s165 + $0x7c] sm:$0xf]
      %v212 = vld [vmem:[%s165 + $0x80] sm:$0xf]
      %v213 = vld [vmem:[%s165 + $0x84] sm:$0xf]
      %v214 = vld [vmem:[%s165 + $0x88] sm:$0xf]
      %v215 = vld [vmem:[%s165 + $0x8c] sm:$0xf]
      %v216 = vld [vmem:[%s2] sm:$0xff]
      %v217 = vld [vmem:[%s2 + $0x8] sm:$0xff]
      %v218 = vld [vmem:[%s2 + $0x10] sm:$0xff]
      %v219 = vld [vmem:[%s2 + $0x18] sm:$0xff]
      %221 = vset.pattern.permute.xlu0 0
      %222 = vperm.xlu0 %221, %v216
      %v223 = vpop.permute.xlu0 %222
      %226 = vset.pattern.permute.xlu0 0
      %227 = vperm.xlu0 %226, %v217
      %v228 = vpop.permute.xlu0 %227
      %231 = vset.pattern.permute.xlu0 0
      %232 = vperm.xlu0 %231, %v218
      %v233 = vpop.permute.xlu0 %232
      %236 = vset.pattern.permute.xlu0 0
      %237 = vperm.xlu0 %236, %v219
      %v238 = vpop.permute.xlu0 %237
      %v248 = vunpack.c.l.b16 %v172
      %v249 = vunpack.c.h.b16 %v172
      %v250 = vunpack.c.l.b16 %v173
      %v251 = vunpack.c.l.b16 %v174
      %v252 = vunpack.c.h.b16 %v174
      %v253 = vunpack.c.l.b16 %v175
      %v254 = vunpack.c.l.b16 %v176
      %v255 = vunpack.c.h.b16 %v176
      %v256 = vunpack.c.l.b16 %v177
      %v257 = vunpack.c.l.b16 %v178
      %v258 = vunpack.c.h.b16 %v178
      %v259 = vunpack.c.l.b16 %v179
      %v260 = vpack.c.b16 %v251, %v248
      %v261 = vpack.c.b16 %v252, %v249
      %v262 = vpack.c.b16 %v253, %v250
      %v263 = vpack.c.b16 %v257, %v254
      %v264 = vpack.c.b16 %v258, %v255
      %v265 = vpack.c.b16 %v259, %v256
      %v306 = vunpack.c.l.b16 %v180
      %v307 = vunpack.c.l.b16 %v181
      %v308 = vunpack.c.l.b16 %v182
      %v309 = vunpack.c.l.b16 %v183
      %v310 = vunpack.c.l.b16 %v184
      %v311 = vunpack.c.l.b16 %v185
      %v312 = vunpack.c.l.b16 %v186
      %v313 = vunpack.c.l.b16 %v187
      %v314 = vunpack.c.l.b16 %v188
      %v315 = vunpack.c.l.b16 %v189
      %v316 = vunpack.c.l.b16 %v190
      %v317 = vunpack.c.l.b16 %v191
      %v318 = vunpack.c.l.b16 %v192
      %v319 = vunpack.c.l.b16 %v193
      %v320 = vunpack.c.l.b16 %v194
      %v321 = vunpack.c.l.b16 %v195
      %v322 = vunpack.c.l.b16 %v196
      %v323 = vunpack.c.l.b16 %v197
      %v324 = vunpack.c.l.b16 %v198
      %v325 = vunpack.c.l.b16 %v199
      %v326 = vunpack.c.l.b16 %v200
      %v327 = vunpack.c.l.b16 %v201
      %v328 = vunpack.c.l.b16 %v202
      %v329 = vunpack.c.l.b16 %v203
      %v330 = vunpack.c.l.b16 %v204
      %v331 = vunpack.c.l.b16 %v205
      %v332 = vunpack.c.l.b16 %v206
      %v333 = vunpack.c.l.b16 %v207
      %v334 = vunpack.c.l.b16 %v208
      %v335 = vunpack.c.l.b16 %v209
      %v336 = vunpack.c.l.b16 %v210
      %v337 = vunpack.c.l.b16 %v211
      %v338 = vunpack.c.l.b16 %v212
      %v339 = vunpack.c.l.b16 %v213
      %v340 = vunpack.c.l.b16 %v214
      %v341 = vunpack.c.l.b16 %v215
      %v342 = vpack.c.b16 %v307, %v306
      %v343 = vpack.c.b16 %v309, %v308
      %v344 = vpack.c.b16 %v311, %v310
      %v345 = vpack.c.b16 %v313, %v312
      %v346 = vpack.c.b16 %v315, %v314
      %v347 = vpack.c.b16 %v317, %v316
      %v348 = vpack.c.b16 %v319, %v318
      %v349 = vpack.c.b16 %v321, %v320
      %v350 = vpack.c.b16 %v323, %v322
      %v351 = vpack.c.b16 %v325, %v324
      %v352 = vpack.c.b16 %v327, %v326
      %v353 = vpack.c.b16 %v329, %v328
      %v354 = vpack.c.b16 %v331, %v330
      %v355 = vpack.c.b16 %v333, %v332
      %v356 = vpack.c.b16 %v335, %v334
      %v357 = vpack.c.b16 %v337, %v336
      %v358 = vpack.c.b16 %v339, %v338
      %v359 = vpack.c.b16 %v341, %v340
      %vm378 = vcmask 261120
      %v380 = vsel %vm378, %v262, 0
      %v383 = vsel %vm378, %v265, 0
      %385 = vmatprep.subr.bf16.mxu0 0
      %386 = vmatpush1.bf16.msra.mxu0 %v349
      %387 = vmatprep.subr.bf16.mxu0 0
      %388 = vmatpush1.bf16.msra.mxu0 %v348
      %389 = vmatprep.subr.bf16.mxu0 0
      %390 = vmatpush1.bf16.msra.mxu0 %v347
      %391 = vmatprep.subr.bf16.mxu0 0
      %392 = vmatpush1.bf16.msra.mxu0 %v346
      %393 = vmatprep.subr.bf16.mxu0 0
      %394 = vmatpush1.bf16.msra.mxu0 %v345
      %395 = vmatprep.subr.bf16.mxu0 0
      %396 = vmatpush1.bf16.msra.mxu0 %v344
      %397 = vmatprep.subr.bf16.mxu0 0
      %398 = vmatpush1.bf16.msra.mxu0 %v343
      %399 = vmatprep.subr.bf16.mxu0 0
      %400 = vmatpush1.bf16.msra.mxu0 %v342
      %401 = vmatprep.subr.bf16.mxu0 0
      %402 = vmatpush2.bf16.msra.mxu0 %v357
      %403 = vmatprep.subr.bf16.mxu0 0
      %404 = vmatpush2.bf16.msra.mxu0 %v356
      %405 = vmatprep.subr.bf16.mxu0 0
      %406 = vmatpush2.bf16.msra.mxu0 %v355
      %407 = vmatprep.subr.bf16.mxu0 0
      %408 = vmatpush2.bf16.msra.mxu0 %v354
      %409 = vmatprep.subr.bf16.mxu0 0
      %410 = vmatpush2.bf16.msra.mxu0 %v353
      %411 = vmatprep.subr.bf16.mxu0 0
      %412 = vmatpush2.bf16.msra.mxu0 %v352
      %413 = vmatprep.subr.bf16.mxu0 0
      %414 = vmatpush2.bf16.msra.mxu0 %v351
      %415 = vmatprep.subr.bf16.mxu0 0
      %416 = vmatpush2.bf16.msra.mxu0 %v350
      %417 = vmatprep.mubr.bf16.mxu0 %v261
      %418 = vmatmul.mubr.bf16.gmra.mxu0 %v260
      %v419 = vpop.f32.mrf.mxu0
      %v420 = vadd.f32 %v223, %v419
      %v421 = vpop.f32.mrf.mxu0
      %v422 = vpop.f32.mrf.mxu0
      %v423 = vadd.f32 %v228, %v422
      %v424 = vpop.f32.mrf.mxu0
      %425 = vmatprep.mubr.bf16.mxu0 %v264
      %426 = vmatmul.mubr.bf16.gmra.mxu0 %v263
      %v427 = vpop.f32.mrf.mxu0
      %v428 = vadd.f32 %v233, %v427
      %v429 = vpop.f32.mrf.mxu0
      %v430 = vpop.f32.mrf.mxu0
      %v431 = vadd.f32 %v238, %v430
      %v432 = vpop.f32.mrf.mxu0
      %433 = vdwg.mxu0
      %434 = vmatprep.subr.bf16.mxu0 0
      %435 = vmatpush1.bf16.msra.mxu0 0
      %436 = vmatprep.subr.bf16.mxu0 0
      %437 = vmatpush1.bf16.msra.mxu0 0
      %438 = vmatprep.subr.bf16.mxu0 0
      %439 = vmatpush1.bf16.msra.mxu0 0
      %440 = vmatprep.subr.bf16.mxu0 0
      %441 = vmatpush1.bf16.msra.mxu0 0
      %442 = vmatprep.subr.bf16.mxu0 0
      %443 = vmatpush1.bf16.msra.mxu0 0
      %444 = vmatprep.subr.bf16.mxu0 0
      %445 = vmatpush1.bf16.msra.mxu0 0
      %446 = vmatprep.subr.bf16.mxu0 0
      %447 = vmatpush1.bf16.msra.mxu0 %v359
      %448 = vmatprep.subr.bf16.mxu0 0
      %449 = vmatpush1.bf16.msra.mxu0 %v358
      %450 = vmatprep.subr.bf16.mxu0 0
      %451 = vmatpush2.bf16.msra.mxu0 0
      %452 = vmatprep.subr.bf16.mxu0 0
      %453 = vmatpush2.bf16.msra.mxu0 0
      %454 = vmatprep.subr.bf16.mxu0 0
      %455 = vmatpush2.bf16.msra.mxu0 0
      %456 = vmatprep.subr.bf16.mxu0 0
      %457 = vmatpush2.bf16.msra.mxu0 0
      %458 = vmatprep.subr.bf16.mxu0 0
      %459 = vmatpush2.bf16.msra.mxu0 0
      %460 = vmatprep.subr.bf16.mxu0 0
      %461 = vmatpush2.bf16.msra.mxu0 0
      %462 = vmatprep.subr.bf16.mxu0 0
      %463 = vmatpush2.bf16.msra.mxu0 0
      %464 = vmatprep.subr.bf16.mxu0 0
      %465 = vmatpush2.bf16.msra.mxu0 0
      %466 = vmatprep.mubr.bf16.mxu0 0
      %467 = vmatmul.mubr.bf16.gmra.mxu0 %v380
      %v468 = vpop.f32.mrf.mxu0
      %v469 = vadd.f32 %v420, %v468
      %v470 = vpop.f32.mrf.mxu0
      %v471 = vpop.f32.mrf.mxu0
      %v472 = vadd.f32 %v423, %v471
      %v473 = vpop.f32.mrf.mxu0
      %474 = vmatprep.mubr.bf16.mxu0 0
      %475 = vmatmul.mubr.bf16.gmra.mxu0 %v383
      %v476 = vpop.f32.mrf.mxu0
      %v477 = vadd.f32 %v428, %v476
      %v478 = vpop.f32.mrf.mxu0
      %v479 = vpop.f32.mrf.mxu0
      %v480 = vadd.f32 %v431, %v479
      %v481 = vpop.f32.mrf.mxu0
      %482 = vdwg.mxu0
      %v483 = vmax.f32 %v469, 0.0
      %v484 = vmax.f32 %v472, 0.0
      %v485 = vmax.f32 %v477, 0.0
      %v486 = vmax.f32 %v480, 0.0
      %v487 = vpack.c.bf16 %v484, %v483
      %v488 = vpack.c.bf16 %v486, %v485
      %v491 = vunpack.c.l.b16 %v487
      %v492 = vunpack.c.h.b16 %v487
      %v493 = vunpack.c.l.b16 %v488
      %v494 = vunpack.c.h.b16 %v488
      %v495 = vpack.c.b16 %v491, %v491
      %v496 = vpack.c.b16 %v492, %v492
      %v497 = vpack.c.b16 %v493, %v493
      %v498 = vpack.c.b16 %v494, %v494
      %vm503 = vcmask 125952
      %504 = vst.msk [vmem:[%s170] sm:$0xf] %vm503, %v495
      %505 = vst.msk [vmem:[%s170 + $0x4] sm:$0xf] %vm503, %v496
      %506 = vst.msk [vmem:[%s170 + $0x8] sm:$0xf] %vm503, %v497
      %507 = vst.msk [vmem:[%s170 + $0xc] sm:$0xf] %vm503, %v498
      %p508 = scmp.lt.s32.totalorder %s14, 1
      %s509 = scalar_select %p508, %s14, 1
      %s510 = smul.addr %s509, 4
      %s511 = smul.addr %s510, 4
      %s512 = scalar_lea.vmem %s3, %s511
      // Predicated region
      $region33: #{unet_forward.8} parent=31 // pred_check
        %p513 = pneg %p100
      $region34: #{unet_forward.8} parent=31 // pred_check_branch
        %515 = sbr.rel (%p513) target = $region36
      $region35: #{unet_forward.8} parent=31 // pred_region
        _
      $region36: #{unet_forward.8} parent=31 // pred_fallthru
        _
    $region32: #{unet_forward.8} parent=5 // pred_fallthru
      _
    %p516 = scmp.le.s32.totalorder 2, %s9
    // Predicated region
    $region37: #{unet_forward.8} parent=5 // pred_check
      %p517 = pneg %p516
    $region38: #{unet_forward.8} parent=5 // pred_check_branch
      %519 = sbr.rel (%p517) target = $region40
    $region39: #{unet_forward.8} parent=5 // pred_region
      %s520 = ssub.s32 %s9, 2
      // Predicated region
      $region41: #{unet_forward.8} parent=39 // pred_check
        %p521 = pneg %p106
      $region42: #{unet_forward.8} parent=39 // pred_check_branch
        %523 = sbr.rel (%p521) target = $region44
      $region43: #{unet_forward.8} parent=39 // pred_region
        %p524 = scmp.lt.s32.totalorder %s15, 1
        %s525 = scalar_select %p524, %s15, 1
        %s526 = smul.addr %s525, 4
        %s527 = smul.addr %s526, 4
        %s528 = scalar_lea.vmem %s3, %s527
      $region44: #{unet_forward.8} parent=39 // pred_fallthru
        _
    $region40: #{unet_forward.8} parent=5 // pred_fallthru
      _
  $region6: #{unet_forward.8} parent=0 // loop_footer
    %s13 = sadd.s32 1, %s9
  $region7: #{unet_forward.8} parent=0 // loop_footer_branch
    %8 = sbr.rel target = $region3
  $region8: #{unet_forward.8} parent=0 // loop_exit
    _

// kernel: unet_forward.9
$region0: #{unet_forward.9}
  #allocation0 [shape = 'u32[]', space=smem, size = 0x4, offset = 0x4, fixed_abs, tag = 'smem constant byte address 0x4 - core index']
  #allocation1 [shape = 'u32[144,128]{1,0:T(1,128)}', space=vmem, size = 0x12000, scoped, tag = 'internal scratch']
  %s0 = inlined_call_operand.vmem [shape: bf16[2,576,64], index: 0, kind: input, shape index: {}]
  %s1 = inlined_call_operand.vmem [shape: bf16[16,576], index: 1, kind: input, shape index: {}]
  %s2 = inlined_call_operand.vmem [shape: f32[16,1], index: 2, kind: input, shape index: {}]
  %s3 = inlined_call_operand.vmem [shape: bf16[2,16,64], index: 3, kind: output, shape index: {}]
  %s4 = sld [smem:[#allocation0]]
  $region45: #{unet_forward.9} parent=0
    _
  %s6 = ssub.s32 1, %s4
  %s7 = scalar_select 0, %s6, %s4
  loop: start=0, step=1, limit=4
  $region2: #{unet_forward.9} parent=0 // loop_pre_header
    _
  $region3: #{unet_forward.9} parent=0 // loop_header
    %s9 = sphi 0, %s13
    %p10 = scmp.ge.s32.totalorder %s9, 4
    %s19 = sphi 0, %s21
    %s22 = sphi 0, %s19
    %s23 = sphi 0, %s22
    %s39 = sphi 0, %s23
    %s43 = sphi 0, %s43
    %s45 = sphi 0, %s43
    %s46 = sphi 0, %s45
    %s60 = sphi 0, %s46
    %s64 = sphi 0, %s64
    %s66 = sphi 0, %s64
    %s67 = sphi 0, %s66
    %s81 = sphi 0, %s67
    %s87 = sphi 0, %s89
    %s90 = sphi 0, %s87
    %s91 = sphi 0, %s90
    %s107 = sphi 0, %s91
  $region4: #{unet_forward.9} parent=0 // loop_header_branch
    %12 = sbr.rel (%p10) target = $region8
  $region5: #{unet_forward.9} parent=0 // loop_body
    %s14 = ssub.s32 %s9, 1
    %s15 = ssub.s32 %s9, 2
    %s16 = sadd.s32 %s9, 1
    %s17 = ssub.s32 %s9, %s16
    %p18 = scmp.eq.s32.totalorder %s17, 0
    %s20 = sadd.s32 %s19, 1
    %s21 = scalar_select %p18, %s19, %s20
    %p24 = pneg %p18
    %p25 = scmp.eq.s32.totalorder %s9, 1
    %p26 = por %p24, %p25
    %p27 = scmp.ne.s32.totalorder %s19, %s22
    %p28 = scmp.eq.s32.totalorder %s9, 0
    %p29 = por %p27, %p28
    %p30 = scmp.ne.s32.totalorder %s19, %s22
    %p31 = scmp.eq.s32.totalorder %s14, 1
    %p32 = por %p30, %p31
    %p33 = scmp.ne.s32.totalorder %s22, %s23
    %p34 = scmp.eq.s32.totalorder %s14, 0
    %p35 = por %p33, %p34
    %p36 = scmp.ne.s32.totalorder %s22, %s23
    %p37 = scmp.eq.s32.totalorder %s15, 1
    %p38 = por %p36, %p37
    %p40 = scmp.ne.s32.totalorder %s23, %s39
    %p41 = scmp.eq.s32.totalorder %s15, 0
    %p42 = por %p40, %p41
    %s44 = sadd.s32 %s43, 1
    %p47 = scmp.eq.s32.totalorder %s9, 1
    %p48 = scmp.ne.s32.totalorder %s43, %s45
    %p49 = scmp.eq.s32.totalorder %s9, 0
    %p50 = por %p48, %p49
    %p51 = scmp.ne.s32.totalorder %s43, %s45
    %p52 = scmp.eq.s32.totalorder %s14, 1
    %p53 = por %p51, %p52
    %p54 = scmp.ne.s32.totalorder %s45, %s46
    %p55 = scmp.eq.s32.totalorder %s14, 0
    %p56 = por %p54, %p55
    %p57 = scmp.ne.s32.totalorder %s45, %s46
    %p58 = scmp.eq.s32.totalorder %s15, 1
    %p59 = por %p57, %p58
    %p61 = scmp.ne.s32.totalorder %s46, %s60
    %p62 = scmp.eq.s32.totalorder %s15, 0
    %p63 = por %p61, %p62
    %s65 = sadd.s32 %s64, 1
    %p68 = scmp.eq.s32.totalorder %s9, 1
    %p69 = scmp.ne.s32.totalorder %s64, %s66
    %p70 = scmp.eq.s32.totalorder %s9, 0
    %p71 = por %p69, %p70
    %p72 = scmp.ne.s32.totalorder %s64, %s66
    %p73 = scmp.eq.s32.totalorder %s14, 1
    %p74 = por %p72, %p73
    %p75 = scmp.ne.s32.totalorder %s66, %s67
    %p76 = scmp.eq.s32.totalorder %s14, 0
    %p77 = por %p75, %p76
    %p78 = scmp.ne.s32.totalorder %s66, %s67
    %p79 = scmp.eq.s32.totalorder %s15, 1
    %p80 = por %p78, %p79
    %p82 = scmp.ne.s32.totalorder %s67, %s81
    %p83 = scmp.eq.s32.totalorder %s15, 0
    %p84 = por %p82, %p83
    %s85 = ssub.s32 %s9, %s16
    %p86 = scmp.eq.s32.totalorder %s85, 0
    %s88 = sadd.s32 %s87, 1
    %s89 = scalar_select %p86, %s87, %s88
    %p92 = pneg %p86
    %p93 = scmp.eq.s32.totalorder %s9, 1
    %p94 = por %p92, %p93
    %p95 = scmp.ne.s32.totalorder %s87, %s90
    %p96 = scmp.eq.s32.totalorder %s9, 0
    %p97 = por %p95, %p96
    %p98 = scmp.ne.s32.totalorder %s87, %s90
    %p99 = scmp.eq.s32.totalorder %s14, 1
    %p100 = por %p98, %p99
    %p101 = scmp.ne.s32.totalorder %s90, %s91
    %p102 = scmp.eq.s32.totalorder %s14, 0
    %p103 = por %p101, %p102
    %p104 = scmp.ne.s32.totalorder %s90, %s91
    %p105 = scmp.eq.s32.totalorder %s15, 1
    %p106 = por %p104, %p105
    %p108 = scmp.ne.s32.totalorder %s91, %s107
    %p109 = scmp.eq.s32.totalorder %s15, 0
    %p110 = por %p108, %p109
    %p111 = scmp.le.s32.totalorder 1, %s9
    %p112 = scmp.lt.s32.totalorder %s9, 3
    %p113 = pnand %p111, %p112
    %p114 = pneg %p113
    // Predicated region
    $region9: #{unet_forward.9} parent=5 // pred_check
      _
    $region10: #{unet_forward.9} parent=5 // pred_check_branch
      %116 = sbr.rel (%p113) target = $region12
    $region11: #{unet_forward.9} parent=5 // pred_region
      %s117 = ssub.s32 %s9, 1
      // Predicated region
      $region13: #{unet_forward.9} parent=11 // pred_check
        %p118 = pneg %p56
      $region14: #{unet_forward.9} parent=11 // pred_check_branch
        %120 = sbr.rel (%p118) target = $region16
      $region15: #{unet_forward.9} parent=11 // pred_region
        _
      $region16: #{unet_forward.9} parent=11 // pred_fallthru
        _
      // Predicated region
      $region17: #{unet_forward.9} parent=11 // pred_check
        %p121 = pneg %p77
      $region18: #{unet_forward.9} parent=11 // pred_check_branch
        %123 = sbr.rel (%p121) target = $region20
      $region19: #{unet_forward.9} parent=11 // pred_region
        _
      $region20: #{unet_forward.9} parent=11 // pred_fallthru
        _
    $region12: #{unet_forward.9} parent=5 // pred_fallthru
      _
    %p124 = scmp.lt.s32.totalorder %s9, 2
    // Predicated region
    $region21: #{unet_forward.9} parent=5 // pred_check
      %p125 = pneg %p124
    $region22: #{unet_forward.9} parent=5 // pred_check_branch
      %127 = sbr.rel (%p125) target = $region24
    $region23: #{unet_forward.9} parent=5 // pred_region
      // Predicated region
      $region25: #{unet_forward.9} parent=23 // pred_check
        %p128 = pneg %p29
      $region26: #{unet_forward.9} parent=23 // pred_check_branch
        %130 = sbr.rel (%p128) target = $region28
      $region27: #{unet_forward.9} parent=23 // pred_region
        %p131 = scmp.lt.s32.totalorder %s9, 1
        %s132 = scalar_select %p131, %s9, 1
        %s133 = smul.addr %s132, 72
        %s134 = smul.addr %s133, 4
        %s135 = scalar_lea.vmem %s0, %s134
      $region28: #{unet_forward.9} parent=23 // pred_fallthru
        _
    $region24: #{unet_forward.9} parent=5 // pred_fallthru
      _
    %p136 = scmp.le.s32.totalorder 1, %s9
    %p137 = scmp.lt.s32.totalorder %s9, 3
    %p138 = pnand %p136, %p137
    %p139 = pneg %p138
    // Predicated region
    $region29: #{unet_forward.9} parent=5 // pred_check
      _
    $region30: #{unet_forward.9} parent=5 // pred_check_branch
      %141 = sbr.rel (%p138) target = $region32
    $region31: #{unet_forward.9} parent=5 // pred_region
      %s142 = ssub.s32 %s9, 1
      %p143 = scmp.lt.s32.totalorder %s14, 1
      %s144 = scalar_select %p143, %s14, 1
      %s145 = smul.addr %s144, 72
      %s146 = smul.addr %s145, 4
      %s147 = scalar_lea.vmem %s0, %s146
      %p148 = pneg %p35
      %p149 = pneg %p32
      %p150 = pneg %p56
      %p151 = pneg %p53
      %p152 = pneg %p77
      %p153 = pneg %p74
      %p154 = pneg %p103
      %p155 = pneg %p100
      %p156 = scmp.lt.s32.totalorder %s14, 1
      %s157 = scalar_select %p156, %s14, 1
      %s158 = smul.addr %s157, 2
      %s159 = smul.addr %s158, 4
      %s160 = scalar_lea.vmem %s3, %s159
      %p161 = scmp.lt.s32.totalorder %s14, 1
      %s162 = scalar_select %p161, %s14, 1
      %s163 = smul.addr %s162, 72
      %s164 = smul.addr %s163, 4
      %s165 = scalar_lea.vmem %s0, %s164
      %p166 = scmp.lt.s32.totalorder %s14, 1
      %s167 = scalar_select %p166, %s14, 1
      %s168 = smul.addr %s167, 2
      %s169 = smul.addr %s168, 4
      %s170 = scalar_lea.vmem %s3, %s169
      %v172 = vld [vmem:[%s1] sm:$0xff]
      %v173 = vld [vmem:[%s1 + $0x8] sm:$0xff]
      %v174 = vld [vmem:[%s1 + $0x10] sm:$0xf]
      %v175 = vld [vmem:[%s1 + $0x14] sm:$0xff]
      %v176 = vld [vmem:[%s1 + $0x1c] sm:$0xff]
      %v177 = vld [vmem:[%s1 + $0x24] sm:$0xf]
      %v178 = vld [vmem:[%s165] sm:$0xf]
      %v179 = vld [vmem:[%s165 + $0x4] sm:$0xf]
      %v180 = vld [vmem:[%s165 + $0x8] sm:$0xf]
      %v181 = vld [vmem:[%s165 + $0xc] sm:$0xf]
      %v182 = vld [vmem:[%s165 + $0x10] sm:$0xf]
      %v183 = vld [vmem:[%s165 + $0x14] sm:$0xf]
      %v184 = vld [vmem:[%s165 + $0x18] sm:$0xf]
      %v185 = vld [vmem:[%s165 + $0x1c] sm:$0xf]
      %v186 = vld [vmem:[%s165 + $0x20] sm:$0xf]
      %v187 = vld [vmem:[%s165 + $0x24] sm:$0xf]
      %v188 = vld [vmem:[%s165 + $0x28] sm:$0xf]
      %v189 = vld [vmem:[%s165 + $0x2c] sm:$0xf]
      %v190 = vld [vmem:[%s165 + $0x30] sm:$0xf]
      %v191 = vld [vmem:[%s165 + $0x34] sm:$0xf]
      %v192 = vld [vmem:[%s165 + $0x38] sm:$0xf]
      %v193 = vld [vmem:[%s165 + $0x3c] sm:$0xf]
      %v194 = vld [vmem:[%s165 + $0x40] sm:$0xf]
      %v195 = vld [vmem:[%s165 + $0x44] sm:$0xf]
      %v196 = vld [vmem:[%s165 + $0x48] sm:$0xf]
      %v197 = vld [vmem:[%s165 + $0x4c] sm:$0xf]
      %v198 = vld [vmem:[%s165 + $0x50] sm:$0xf]
      %v199 = vld [vmem:[%s165 + $0x54] sm:$0xf]
      %v200 = vld [vmem:[%s165 + $0x58] sm:$0xf]
      %v201 = vld [vmem:[%s165 + $0x5c] sm:$0xf]
      %v202 = vld [vmem:[%s165 + $0x60] sm:$0xf]
      %v203 = vld [vmem:[%s165 + $0x64] sm:$0xf]
      %v204 = vld [vmem:[%s165 + $0x68] sm:$0xf]
      %v205 = vld [vmem:[%s165 + $0x6c] sm:$0xf]
      %v206 = vld [vmem:[%s165 + $0x70] sm:$0xf]
      %v207 = vld [vmem:[%s165 + $0x74] sm:$0xf]
      %v208 = vld [vmem:[%s165 + $0x78] sm:$0xf]
      %v209 = vld [vmem:[%s165 + $0x7c] sm:$0xf]
      %v210 = vld [vmem:[%s165 + $0x80] sm:$0xf]
      %v211 = vld [vmem:[%s165 + $0x84] sm:$0xf]
      %v212 = vld [vmem:[%s165 + $0x88] sm:$0xf]
      %v213 = vld [vmem:[%s165 + $0x8c] sm:$0xf]
      %v214 = vld [vmem:[%s165 + $0x90] sm:$0xf]
      %v215 = vld [vmem:[%s165 + $0x94] sm:$0xf]
      %v216 = vld [vmem:[%s165 + $0x98] sm:$0xf]
      %v217 = vld [vmem:[%s165 + $0x9c] sm:$0xf]
      %v218 = vld [vmem:[%s165 + $0xa0] sm:$0xf]
      %v219 = vld [vmem:[%s165 + $0xa4] sm:$0xf]
      %v220 = vld [vmem:[%s165 + $0xa8] sm:$0xf]
      %v221 = vld [vmem:[%s165 + $0xac] sm:$0xf]
      %v222 = vld [vmem:[%s165 + $0xb0] sm:$0xf]
      %v223 = vld [vmem:[%s165 + $0xb4] sm:$0xf]
      %v224 = vld [vmem:[%s165 + $0xb8] sm:$0xf]
      %v225 = vld [vmem:[%s165 + $0xbc] sm:$0xf]
      %v226 = vld [vmem:[%s165 + $0xc0] sm:$0xf]
      %v227 = vld [vmem:[%s165 + $0xc4] sm:$0xf]
      %v228 = vld [vmem:[%s165 + $0xc8] sm:$0xf]
      %v229 = vld [vmem:[%s165 + $0xcc] sm:$0xf]
      %v230 = vld [vmem:[%s165 + $0xd0] sm:$0xf]
      %v231 = vld [vmem:[%s165 + $0xd4] sm:$0xf]
      %v232 = vld [vmem:[%s165 + $0xd8] sm:$0xf]
      %v233 = vld [vmem:[%s165 + $0xdc] sm:$0xf]
      %v234 = vld [vmem:[%s165 + $0xe0] sm:$0xf]
      %v235 = vld [vmem:[%s165 + $0xe4] sm:$0xf]
      %v236 = vld [vmem:[%s165 + $0xe8] sm:$0xf]
      %v237 = vld [vmem:[%s165 + $0xec] sm:$0xf]
      %v238 = vld [vmem:[%s165 + $0xf0] sm:$0xf]
      %v239 = vld [vmem:[%s165 + $0xf4] sm:$0xf]
      %v240 = vld [vmem:[%s165 + $0xf8] sm:$0xf]
      %v241 = vld [vmem:[%s165 + $0xfc] sm:$0xf]
      %v242 = vld [vmem:[%s165 + $0x100] sm:$0xf]
      %v243 = vld [vmem:[%s165 + $0x104] sm:$0xf]
      %v244 = vld [vmem:[%s165 + $0x108] sm:$0xf]
      %v245 = vld [vmem:[%s165 + $0x10c] sm:$0xf]
      %v246 = vld [vmem:[%s165 + $0x110] sm:$0xf]
      %v247 = vld [vmem:[%s165 + $0x114] sm:$0xf]
      %v248 = vld [vmem:[%s165 + $0x118] sm:$0xf]
      %v249 = vld [vmem:[%s165 + $0x11c] sm:$0xf]
      %v250 = vld [vmem:[%s2] sm:$0xff]
      %v251 = vld [vmem:[%s2 + $0x8] sm:$0xff]
      %253 = vset.pattern.permute.xlu0 0
      %254 = vperm.xlu0 %253, %v250
      %v255 = vpop.permute.xlu0 %254
      %258 = vset.pattern.permute.xlu0 0
      %259 = vperm.xlu0 %258, %v251
      %v260 = vpop.permute.xlu0 %259
      %v268 = vunpack.c.l.b16 %v172
      %v269 = vunpack.c.h.b16 %v172
      %v270 = vunpack.c.l.b16 %v173
      %v271 = vunpack.c.h.b16 %v173
      %v272 = vunpack.c.l.b16 %v174
      %v273 = vunpack.c.l.b16 %v175
      %v274 = vunpack.c.h.b16 %v175
      %v275 = vunpack.c.l.b16 %v176
      %v276 = vunpack.c.h.b16 %v176
      %v277 = vunpack.c.l.b16 %v177
      %v278 = vpack.c.b16 %v273, %v268
      %v279 = vpack.c.b16 %v274, %v269
      %v280 = vpack.c.b16 %v275, %v270
      %v281 = vpack.c.b16 %v276, %v271
      %v282 = vpack.c.b16 %v277, %v272
      %v359 = vunpack.c.l.b16 %v178
      %v360 = vunpack.c.l.b16 %v179
      %v361 = vunpack.c.l.b16 %v180
      %v362 = vunpack.c.l.b16 %v181
      %v363 = vunpack.c.l.b16 %v182
      %v364 = vunpack.c.l.b16 %v183
      %v365 = vunpack.c.l.b16 %v184
      %v366 = vunpack.c.l.b16 %v185
      %v367 = vunpack.c.l.b16 %v186
      %v368 = vunpack.c.l.b16 %v187
      %v369 = vunpack.c.l.b16 %v188
      %v370 = vunpack.c.l.b16 %v189
      %v371 = vunpack.c.l.b16 %v190
      %v372 = vunpack.c.l.b16 %v191
      %v373 = vunpack.c.l.b16 %v192
      %v374 = vunpack.c.l.b16 %v193
      %v375 = vunpack.c.l.b16 %v194
      %v376 = vunpack.c.l.b16 %v195
      %v377 = vunpack.c.l.b16 %v196
      %v378 = vunpack.c.l.b16 %v197
      %v379 = vunpack.c.l.b16 %v198
      %v380 = vunpack.c.l.b16 %v199
      %v381 = vunpack.c.l.b16 %v200
      %v382 = vunpack.c.l.b16 %v201
      %v383 = vunpack.c.l.b16 %v202
      %v384 = vunpack.c.l.b16 %v203
      %v385 = vunpack.c.l.b16 %v204
      %v386 = vunpack.c.l.b16 %v205
      %v387 = vunpack.c.l.b16 %v206
      %v388 = vunpack.c.l.b16 %v207
      %v389 = vunpack.c.l.b16 %v208
      %v390 = vunpack.c.l.b16 %v209
      %v391 = vunpack.c.l.b16 %v210
      %v392 = vunpack.c.l.b16 %v211
      %v393 = vunpack.c.l.b16 %v212
      %v394 = vunpack.c.l.b16 %v213
      %v395 = vunpack.c.l.b16 %v214
      %v396 = vunpack.c.l.b16 %v215
      %v397 = vunpack.c.l.b16 %v216
      %v398 = vunpack.c.l.b16 %v217
      %v399 = vunpack.c.l.b16 %v218
      %v400 = vunpack.c.l.b16 %v219
      %v401 = vunpack.c.l.b16 %v220
      %v402 = vunpack.c.l.b16 %v221
      %v403 = vunpack.c.l.b16 %v222
      %v404 = vunpack.c.l.b16 %v223
      %v405 = vunpack.c.l.b16 %v224
      %v406 = vunpack.c.l.b16 %v225
      %v407 = vunpack.c.l.b16 %v226
      %v408 = vunpack.c.l.b16 %v227
      %v409 = vunpack.c.l.b16 %v228
      %v410 = vunpack.c.l.b16 %v229
      %v411 = vunpack.c.l.b16 %v230
      %v412 = vunpack.c.l.b16 %v231
      %v413 = vunpack.c.l.b16 %v232
      %v414 = vunpack.c.l.b16 %v233
      %v415 = vunpack.c.l.b16 %v234
      %v416 = vunpack.c.l.b16 %v235
      %v417 = vunpack.c.l.b16 %v236
      %v418 = vunpack.c.l.b16 %v237
      %v419 = vunpack.c.l.b16 %v238
      %v420 = vunpack.c.l.b16 %v239
      %v421 = vunpack.c.l.b16 %v240
      %v422 = vunpack.c.l.b16 %v241
      %v423 = vunpack.c.l.b16 %v242
      %v424 = vunpack.c.l.b16 %v243
      %v425 = vunpack.c.l.b16 %v244
      %v426 = vunpack.c.l.b16 %v245
      %v427 = vunpack.c.l.b16 %v246
      %v428 = vunpack.c.l.b16 %v247
      %v429 = vunpack.c.l.b16 %v248
      %v430 = vunpack.c.l.b16 %v249
      %v431 = vpack.c.b16 %v360, %v359
      %v432 = vpack.c.b16 %v362, %v361
      %v433 = vpack.c.b16 %v364, %v363
      %v434 = vpack.c.b16 %v366, %v365
      %v435 = vpack.c.b16 %v368, %v367
      %v436 = vpack.c.b16 %v370, %v369
      %v437 = vpack.c.b16 %v372, %v371
      %v438 = vpack.c.b16 %v374, %v373
      %v439 = vpack.c.b16 %v376, %v375
      %v440 = vpack.c.b16 %v378, %v377
      %v441 = vpack.c.b16 %v380, %v379
      %v442 = vpack.c.b16 %v382, %v381
      %v443 = vpack.c.b16 %v384, %v383
      %v444 = vpack.c.b16 %v386, %v385
      %v445 = vpack.c.b16 %v388, %v387
      %v446 = vpack.c.b16 %v390, %v389
      %v447 = vpack.c.b16 %v392, %v391
      %v448 = vpack.c.b16 %v394, %v393
      %v449 = vpack.c.b16 %v396, %v395
      %v450 = vpack.c.b16 %v398, %v397
      %v451 = vpack.c.b16 %v400, %v399
      %v452 = vpack.c.b16 %v402, %v401
      %v453 = vpack.c.b16 %v404, %v403
      %v454 = vpack.c.b16 %v406, %v405
      %v455 = vpack.c.b16 %v408, %v407
      %v456 = vpack.c.b16 %v410, %v409
      %v457 = vpack.c.b16 %v412, %v411
      %v458 = vpack.c.b16 %v414, %v413
      %v459 = vpack.c.b16 %v416, %v415
      %v460 = vpack.c.b16 %v418, %v417
      %v461 = vpack.c.b16 %v420, %v419
      %v462 = vpack.c.b16 %v422, %v421
      %v463 = vpack.c.b16 %v424, %v423
      %v464 = vpack.c.b16 %v426, %v425
      %v465 = vpack.c.b16 %v428, %v427
      %v466 = vpack.c.b16 %v430, %v429
      %vm503 = vcmask 523264
      %v505 = vsel %vm503, %v282, 0
      %507 = vmatprep.subr.bf16.mxu0 0
      %508 = vmatpush1.bf16.msra.mxu0 %v438
      %509 = vmatprep.subr.bf16.mxu0 0
      %510 = vmatpush1.bf16.msra.mxu0 %v437
      %511 = vmatprep.subr.bf16.mxu0 0
      %512 = vmatpush1.bf16.msra.mxu0 %v436
      %513 = vmatprep.subr.bf16.mxu0 0
      %514 = vmatpush1.bf16.msra.mxu0 %v435
      %515 = vmatprep.subr.bf16.mxu0 0
      %516 = vmatpush1.bf16.msra.mxu0 %v434
      %517 = vmatprep.subr.bf16.mxu0 0
      %518 = vmatpush1.bf16.msra.mxu0 %v433
      %519 = vmatprep.subr.bf16.mxu0 0
      %520 = vmatpush1.bf16.msra.mxu0 %v432
      %521 = vmatprep.subr.bf16.mxu0 0
      %522 = vmatpush1.bf16.msra.mxu0 %v431
      %523 = vmatprep.subr.bf16.mxu0 0
      %524 = vmatpush2.bf16.msra.mxu0 %v446
      %525 = vmatprep.subr.bf16.mxu0 0
      %526 = vmatpush2.bf16.msra.mxu0 %v445
      %527 = vmatprep.subr.bf16.mxu0 0
      %528 = vmatpush2.bf16.msra.mxu0 %v444
      %529 = vmatprep.subr.bf16.mxu0 0
      %530 = vmatpush2.bf16.msra.mxu0 %v443
      %531 = vmatprep.subr.bf16.mxu0 0
      %532 = vmatpush2.bf16.msra.mxu0 %v442
      %533 = vmatprep.subr.bf16.mxu0 0
      %534 = vmatpush2.bf16.msra.mxu0 %v441
      %535 = vmatprep.subr.bf16.mxu0 0
      %536 = vmatpush2.bf16.msra.mxu0 %v440
      %537 = vmatprep.subr.bf16.mxu0 0
      %538 = vmatpush2.bf16.msra.mxu0 %v439
      %539 = vmatprep.mubr.bf16.mxu0 %v279
      %540 = vmatmul.mubr.bf16.gmra.mxu0 %v278
      %v541 = vpop.f32.mrf.mxu0
      %v542 = vadd.f32 %v255, %v541
      %v543 = vpop.f32.mrf.mxu0
      %v544 = vpop.f32.mrf.mxu0
      %v545 = vadd.f32 %v260, %v544
      %v546 = vpop.f32.mrf.mxu0
      %547 = vdwg.mxu0
      %548 = vmatprep.subr.bf16.mxu0 0
      %549 = vmatpush1.bf16.msra.mxu0 %v454
      %550 = vmatprep.subr.bf16.mxu0 0
      %551 = vmatpush1.bf16.msra.mxu0 %v453
      %552 = vmatprep.subr.bf16.mxu0 0
      %553 = vmatpush1.bf16.msra.mxu0 %v452
      %554 = vmatprep.subr.bf16.mxu0 0
      %555 = vmatpush1.bf16.msra.mxu0 %v451
      %556 = vmatprep.subr.bf16.mxu0 0
      %557 = vmatpush1.bf16.msra.mxu0 %v450
      %558 = vmatprep.subr.bf16.mxu0 0
      %559 = vmatpush1.bf16.msra.mxu0 %v449
      %560 = vmatprep.subr.bf16.mxu0 0
      %561 = vmatpush1.bf16.msra.mxu0 %v448
      %562 = vmatprep.subr.bf16.mxu0 0
      %563 = vmatpush1.bf16.msra.mxu0 %v447
      %564 = vmatprep.subr.bf16.mxu0 0
      %565 = vmatpush2.bf16.msra.mxu0 %v462
      %566 = vmatprep.subr.bf16.mxu0 0
      %567 = vmatpush2.bf16.msra.mxu0 %v461
      %568 = vmatprep.subr.bf16.mxu0 0
      %569 = vmatpush2.bf16.msra.mxu0 %v460
      %570 = vmatprep.subr.bf16.mxu0 0
      %571 = vmatpush2.bf16.msra.mxu0 %v459
      %572 = vmatprep.subr.bf16.mxu0 0
      %573 = vmatpush2.bf16.msra.mxu0 %v458
      %574 = vmatprep.subr.bf16.mxu0 0
      %575 = vmatpush2.bf16.msra.mxu0 %v457
      %576 = vmatprep.subr.bf16.mxu0 0
      %577 = vmatpush2.bf16.msra.mxu0 %v456
      %578 = vmatprep.subr.bf16.mxu0 0
      %579 = vmatpush2.bf16.msra.mxu0 %v455
      %580 = vmatprep.mubr.bf16.mxu0 %v281
      %581 = vmatmul.mubr.bf16.gmra.mxu0 %v280
      %v582 = vpop.f32.mrf.mxu0
      %v583 = vadd.f32 %v542, %v582
      %v584 = vpop.f32.mrf.mxu0
      %v585 = vpop.f32.mrf.mxu0
      %v586 = vadd.f32 %v545, %v585
      %v587 = vpop.f32.mrf.mxu0
      %588 = vdwg.mxu0
      %589 = vmatprep.subr.bf16.mxu0 0
      %590 = vmatpush1.bf16.msra.mxu0 0
      %591 = vmatprep.subr.bf16.mxu0 0
      %592 = vmatpush1.bf16.msra.mxu0 0
      %593 = vmatprep.subr.bf16.mxu0 0
      %594 = vmatpush1.bf16.msra.mxu0 0
      %595 = vmatprep.subr.bf16.mxu0 0
      %596 = vmatpush1.bf16.msra.mxu0 0
      %597 = vmatprep.subr.bf16.mxu0 0
      %598 = vmatpush1.bf16.msra.mxu0 %v466
      %599 = vmatprep.subr.bf16.mxu0 0
      %600 = vmatpush1.bf16.msra.mxu0 %v465
      %601 = vmatprep.subr.bf16.mxu0 0
      %602 = vmatpush1.bf16.msra.mxu0 %v464
      %603 = vmatprep.subr.bf16.mxu0 0
      %604 = vmatpush1.bf16.msra.mxu0 %v463
      %605 = vmatprep.subr.bf16.mxu0 0
      %606 = vmatpush2.bf16.msra.mxu0 0
      %607 = vmatprep.subr.bf16.mxu0 0
      %608 = vmatpush2.bf16.msra.mxu0 0
      %609 = vmatprep.subr.bf16.mxu0 0
      %610 = vmatpush2.bf16.msra.mxu0 0
      %611 = vmatprep.subr.bf16.mxu0 0
      %612 = vmatpush2.bf16.msra.mxu0 0
      %613 = vmatprep.subr.bf16.mxu0 0
      %614 = vmatpush2.bf16.msra.mxu0 0
      %615 = vmatprep.subr.bf16.mxu0 0
      %616 = vmatpush2.bf16.msra.mxu0 0
      %617 = vmatprep.subr.bf16.mxu0 0
      %618 = vmatpush2.bf16.msra.mxu0 0
      %619 = vmatprep.subr.bf16.mxu0 0
      %620 = vmatpush2.bf16.msra.mxu0 0
      %621 = vmatprep.mubr.bf16.mxu0 0
      %622 = vmatmul.mubr.bf16.gmra.mxu0 %v505
      %v623 = vpop.f32.mrf.mxu0
      %v624 = vadd.f32 %v583, %v623
      %v625 = vpop.f32.mrf.mxu0
      %v626 = vpop.f32.mrf.mxu0
      %v627 = vadd.f32 %v586, %v626
      %v628 = vpop.f32.mrf.mxu0
      %629 = vdwg.mxu0
      %v630 = vmax.f32 %v624, 0.0
      %v631 = vmax.f32 %v627, 0.0
      %v632 = vpack.c.bf16 %v631, %v630
      %v634 = vunpack.c.l.b16 %v632
      %v635 = vunpack.c.h.b16 %v632
      %v636 = vpack.c.b16 %v634, %v634
      %v637 = vpack.c.b16 %v635, %v635
      %vm640 = vcmask 519168
      %641 = vst.msk [vmem:[%s170] sm:$0xf] %vm640, %v636
      %642 = vst.msk [vmem:[%s170 + $0x4] sm:$0xf] %vm640, %v637
      %p643 = scmp.lt.s32.totalorder %s14, 1
      %s644 = scalar_select %p643, %s14, 1
      %s645 = smul.addr %s644, 2
      %s646 = smul.addr %s645, 4
      %s647 = scalar_lea.vmem %s3, %s646
      // Predicated region
      $region33: #{unet_forward.9} parent=31 // pred_check
        %p648 = pneg %p100
      $region34: #{unet_forward.9} parent=31 // pred_check_branch
        %650 = sbr.rel (%p648) target = $region36
      $region35: #{unet_forward.9} parent=31 // pred_region
        _
      $region36: #{unet_forward.9} parent=31 // pred_fallthru
        _
    $region32: #{unet_forward.9} parent=5 // pred_fallthru
      _
    %p651 = scmp.le.s32.totalorder 2, %s9
    // Predicated region
    $region37: #{unet_forward.9} parent=5 // pred_check
      %p652 = pneg %p651
    $region38: #{unet_forward.9} parent=5 // pred_check_branch
      %654 = sbr.rel (%p652) target = $region40
    $region39: #{unet_forward.9} parent=5 // pred_region
      %s655 = ssub.s32 %s9, 2
      // Predicated region
      $region41: #{unet_forward.9} parent=39 // pred_check
        %p656 = pneg %p106
      $region42: #{unet_forward.9} parent=39 // pred_check_branch
        %658 = sbr.rel (%p656) target = $region44
      $region43: #{unet_forward.9} parent=39 // pred_region
        %p659 = scmp.lt.s32.totalorder %s15, 1
        %s660 = scalar_select %p659, %s15, 1
        %s661 = smul.addr %s660, 2
        %s662 = smul.addr %s661, 4
        %s663 = scalar_lea.vmem %s3, %s662
      $region44: #{unet_forward.9} parent=39 // pred_fallthru
        _
    $region40: #{unet_forward.9} parent=5 // pred_fallthru
      _
  $region6: #{unet_forward.9} parent=0 // loop_footer
    %s13 = sadd.s32 1, %s9
  $region7: #{unet_forward.9} parent=0 // loop_footer_branch
    %8 = sbr.rel target = $region3
  $region8: #{unet_forward.9} parent=0 // loop_exit
    _

// kernel: unet_forward.10
$region0: #{unet_forward.10}
  #allocation0 [shape = 'u32[]', space=smem, size = 0x4, offset = 0x4, fixed_abs, tag = 'smem constant byte address 0x4 - core index']
  #allocation1 [shape = 'u32[144,128]{1,0:T(1,128)}', space=vmem, size = 0x12000, scoped, tag = 'internal scratch']
  %s0 = inlined_call_operand.vmem [shape: bf16[2,288,256], index: 0, kind: input, shape index: {}]
  %s1 = inlined_call_operand.vmem [shape: bf16[16,288], index: 1, kind: input, shape index: {}]
  %s2 = inlined_call_operand.vmem [shape: f32[16,1], index: 2, kind: input, shape index: {}]
  %s3 = inlined_call_operand.vmem [shape: bf16[2,16,256], index: 3, kind: output, shape index: {}]
  %s4 = sld [smem:[#allocation0]]
  $region45: #{unet_forward.10} parent=0
    _
  %s6 = ssub.s32 1, %s4
  %s7 = scalar_select 0, %s6, %s4
  loop: start=0, step=1, limit=4
  $region2: #{unet_forward.10} parent=0 // loop_pre_header
    _
  $region3: #{unet_forward.10} parent=0 // loop_header
    %s9 = sphi 0, %s13
    %p10 = scmp.ge.s32.totalorder %s9, 4
    %s19 = sphi 0, %s21
    %s22 = sphi 0, %s19
    %s23 = sphi 0, %s22
    %s39 = sphi 0, %s23
    %s43 = sphi 0, %s43
    %s45 = sphi 0, %s43
    %s46 = sphi 0, %s45
    %s60 = sphi 0, %s46
    %s64 = sphi 0, %s64
    %s66 = sphi 0, %s64
    %s67 = sphi 0, %s66
    %s81 = sphi 0, %s67
    %s87 = sphi 0, %s89
    %s90 = sphi 0, %s87
    %s91 = sphi 0, %s90
    %s107 = sphi 0, %s91
  $region4: #{unet_forward.10} parent=0 // loop_header_branch
    %12 = sbr.rel (%p10) target = $region8
  $region5: #{unet_forward.10} parent=0 // loop_body
    %s14 = ssub.s32 %s9, 1
    %s15 = ssub.s32 %s9, 2
    %s16 = sadd.s32 %s9, 1
    %s17 = ssub.s32 %s9, %s16
    %p18 = scmp.eq.s32.totalorder %s17, 0
    %s20 = sadd.s32 %s19, 1
    %s21 = scalar_select %p18, %s19, %s20
    %p24 = pneg %p18
    %p25 = scmp.eq.s32.totalorder %s9, 1
    %p26 = por %p24, %p25
    %p27 = scmp.ne.s32.totalorder %s19, %s22
    %p28 = scmp.eq.s32.totalorder %s9, 0
    %p29 = por %p27, %p28
    %p30 = scmp.ne.s32.totalorder %s19, %s22
    %p31 = scmp.eq.s32.totalorder %s14, 1
    %p32 = por %p30, %p31
    %p33 = scmp.ne.s32.totalorder %s22, %s23
    %p34 = scmp.eq.s32.totalorder %s14, 0
    %p35 = por %p33, %p34
    %p36 = scmp.ne.s32.totalorder %s22, %s23
    %p37 = scmp.eq.s32.totalorder %s15, 1
    %p38 = por %p36, %p37
    %p40 = scmp.ne.s32.totalorder %s23, %s39
    %p41 = scmp.eq.s32.totalorder %s15, 0
    %p42 = por %p40, %p41
    %s44 = sadd.s32 %s43, 1
    %p47 = scmp.eq.s32.totalorder %s9, 1
    %p48 = scmp.ne.s32.totalorder %s43, %s45
    %p49 = scmp.eq.s32.totalorder %s9, 0
    %p50 = por %p48, %p49
    %p51 = scmp.ne.s32.totalorder %s43, %s45
    %p52 = scmp.eq.s32.totalorder %s14, 1
    %p53 = por %p51, %p52
    %p54 = scmp.ne.s32.totalorder %s45, %s46
    %p55 = scmp.eq.s32.totalorder %s14, 0
    %p56 = por %p54, %p55
    %p57 = scmp.ne.s32.totalorder %s45, %s46
    %p58 = scmp.eq.s32.totalorder %s15, 1
    %p59 = por %p57, %p58
    %p61 = scmp.ne.s32.totalorder %s46, %s60
    %p62 = scmp.eq.s32.totalorder %s15, 0
    %p63 = por %p61, %p62
    %s65 = sadd.s32 %s64, 1
    %p68 = scmp.eq.s32.totalorder %s9, 1
    %p69 = scmp.ne.s32.totalorder %s64, %s66
    %p70 = scmp.eq.s32.totalorder %s9, 0
    %p71 = por %p69, %p70
    %p72 = scmp.ne.s32.totalorder %s64, %s66
    %p73 = scmp.eq.s32.totalorder %s14, 1
    %p74 = por %p72, %p73
    %p75 = scmp.ne.s32.totalorder %s66, %s67
    %p76 = scmp.eq.s32.totalorder %s14, 0
    %p77 = por %p75, %p76
    %p78 = scmp.ne.s32.totalorder %s66, %s67
    %p79 = scmp.eq.s32.totalorder %s15, 1
    %p80 = por %p78, %p79
    %p82 = scmp.ne.s32.totalorder %s67, %s81
    %p83 = scmp.eq.s32.totalorder %s15, 0
    %p84 = por %p82, %p83
    %s85 = ssub.s32 %s9, %s16
    %p86 = scmp.eq.s32.totalorder %s85, 0
    %s88 = sadd.s32 %s87, 1
    %s89 = scalar_select %p86, %s87, %s88
    %p92 = pneg %p86
    %p93 = scmp.eq.s32.totalorder %s9, 1
    %p94 = por %p92, %p93
    %p95 = scmp.ne.s32.totalorder %s87, %s90
    %p96 = scmp.eq.s32.totalorder %s9, 0
    %p97 = por %p95, %p96
    %p98 = scmp.ne.s32.totalorder %s87, %s90
    %p99 = scmp.eq.s32.totalorder %s14, 1
    %p100 = por %p98, %p99
    %p101 = scmp.ne.s32.totalorder %s90, %s91
    %p102 = scmp.eq.s32.totalorder %s14, 0
    %p103 = por %p101, %p102
    %p104 = scmp.ne.s32.totalorder %s90, %s91
    %p105 = scmp.eq.s32.totalorder %s15, 1
    %p106 = por %p104, %p105
    %p108 = scmp.ne.s32.totalorder %s91, %s107
    %p109 = scmp.eq.s32.totalorder %s15, 0
    %p110 = por %p108, %p109
    %p111 = scmp.le.s32.totalorder 1, %s9
    %p112 = scmp.lt.s32.totalorder %s9, 3
    %p113 = pnand %p111, %p112
    %p114 = pneg %p113
    // Predicated region
    $region9: #{unet_forward.10} parent=5 // pred_check
      _
    $region10: #{unet_forward.10} parent=5 // pred_check_branch
      %116 = sbr.rel (%p113) target = $region12
    $region11: #{unet_forward.10} parent=5 // pred_region
      %s117 = ssub.s32 %s9, 1
      // Predicated region
      $region13: #{unet_forward.10} parent=11 // pred_check
        %p118 = pneg %p56
      $region14: #{unet_forward.10} parent=11 // pred_check_branch
        %120 = sbr.rel (%p118) target = $region16
      $region15: #{unet_forward.10} parent=11 // pred_region
        _
      $region16: #{unet_forward.10} parent=11 // pred_fallthru
        _
      // Predicated region
      $region17: #{unet_forward.10} parent=11 // pred_check
        %p121 = pneg %p77
      $region18: #{unet_forward.10} parent=11 // pred_check_branch
        %123 = sbr.rel (%p121) target = $region20
      $region19: #{unet_forward.10} parent=11 // pred_region
        _
      $region20: #{unet_forward.10} parent=11 // pred_fallthru
        _
    $region12: #{unet_forward.10} parent=5 // pred_fallthru
      _
    %p124 = scmp.lt.s32.totalorder %s9, 2
    // Predicated region
    $region21: #{unet_forward.10} parent=5 // pred_check
      %p125 = pneg %p124
    $region22: #{unet_forward.10} parent=5 // pred_check_branch
      %127 = sbr.rel (%p125) target = $region24
    $region23: #{unet_forward.10} parent=5 // pred_region
      // Predicated region
      $region25: #{unet_forward.10} parent=23 // pred_check
        %p128 = pneg %p29
      $region26: #{unet_forward.10} parent=23 // pred_check_branch
        %130 = sbr.rel (%p128) target = $region28
      $region27: #{unet_forward.10} parent=23 // pred_region
        %p131 = scmp.lt.s32.totalorder %s9, 1
        %s132 = scalar_select %p131, %s9, 1
        %s133 = smul.addr %s132, 72
        %s134 = smul.addr %s133, 4
        %s135 = scalar_lea.vmem %s0, %s134
      $region28: #{unet_forward.10} parent=23 // pred_fallthru
        _
    $region24: #{unet_forward.10} parent=5 // pred_fallthru
      _
    %p136 = scmp.le.s32.totalorder 1, %s9
    %p137 = scmp.lt.s32.totalorder %s9, 3
    %p138 = pnand %p136, %p137
    %p139 = pneg %p138
    // Predicated region
    $region29: #{unet_forward.10} parent=5 // pred_check
      _
    $region30: #{unet_forward.10} parent=5 // pred_check_branch
      %141 = sbr.rel (%p138) target = $region32
    $region31: #{unet_forward.10} parent=5 // pred_region
      %s142 = ssub.s32 %s9, 1
      %p143 = scmp.lt.s32.totalorder %s14, 1
      %s144 = scalar_select %p143, %s14, 1
      %s145 = smul.addr %s144, 72
      %s146 = smul.addr %s145, 4
      %s147 = scalar_lea.vmem %s0, %s146
      %p148 = pneg %p35
      %p149 = pneg %p32
      %p150 = pneg %p56
      %p151 = pneg %p53
      %p152 = pneg %p77
      %p153 = pneg %p74
      %p154 = pneg %p103
      %p155 = pneg %p100
      %p156 = scmp.lt.s32.totalorder %s14, 1
      %s157 = scalar_select %p156, %s14, 1
      %s158 = smul.addr %s157, 4
      %s159 = smul.addr %s158, 4
      %s160 = scalar_lea.vmem %s3, %s159
      %p161 = scmp.lt.s32.totalorder %s14, 1
      %s162 = scalar_select %p161, %s14, 1
      %s163 = smul.addr %s162, 72
      %s164 = smul.addr %s163, 4
      %s165 = scalar_lea.vmem %s0, %s164
      %p166 = scmp.lt.s32.totalorder %s14, 1
      %s167 = scalar_select %p166, %s14, 1
      %s168 = smul.addr %s167, 4
      %s169 = smul.addr %s168, 4
      %s170 = scalar_lea.vmem %s3, %s169
      %v172 = vld [vmem:[%s1] sm:$0xff]
      %v173 = vld [vmem:[%s1 + $0x8] sm:$0xf]
      %v174 = vld [vmem:[%s1 + $0xc] sm:$0xff]
      %v175 = vld [vmem:[%s1 + $0x14] sm:$0xf]
      %v176 = vld [vmem:[%s165] sm:$0xff]
      %v177 = vld [vmem:[%s165 + $0x8] sm:$0xff]
      %v178 = vld [vmem:[%s165 + $0x10] sm:$0xff]
      %v179 = vld [vmem:[%s165 + $0x18] sm:$0xff]
      %v180 = vld [vmem:[%s165 + $0x20] sm:$0xff]
      %v181 = vld [vmem:[%s165 + $0x28] sm:$0xff]
      %v182 = vld [vmem:[%s165 + $0x30] sm:$0xff]
      %v183 = vld [vmem:[%s165 + $0x38] sm:$0xff]
      %v184 = vld [vmem:[%s165 + $0x40] sm:$0xff]
      %v185 = vld [vmem:[%s165 + $0x48] sm:$0xff]
      %v186 = vld [vmem:[%s165 + $0x50] sm:$0xff]
      %v187 = vld [vmem:[%s165 + $0x58] sm:$0xff]
      %v188 = vld [vmem:[%s165 + $0x60] sm:$0xff]
      %v189 = vld [vmem:[%s165 + $0x68] sm:$0xff]
      %v190 = vld [vmem:[%s165 + $0x70] sm:$0xff]
      %v191 = vld [vmem:[%s165 + $0x78] sm:$0xff]
      %v192 = vld [vmem:[%s165 + $0x80] sm:$0xff]
      %v193 = vld [vmem:[%s165 + $0x88] sm:$0xff]
      %v194 = vld [vmem:[%s165 + $0x90] sm:$0xff]
      %v195 = vld [vmem:[%s165 + $0x98] sm:$0xff]
      %v196 = vld [vmem:[%s165 + $0xa0] sm:$0xff]
      %v197 = vld [vmem:[%s165 + $0xa8] sm:$0xff]
      %v198 = vld [vmem:[%s165 + $0xb0] sm:$0xff]
      %v199 = vld [vmem:[%s165 + $0xb8] sm:$0xff]
      %v200 = vld [vmem:[%s165 + $0xc0] sm:$0xff]
      %v201 = vld [vmem:[%s165 + $0xc8] sm:$0xff]
      %v202 = vld [vmem:[%s165 + $0xd0] sm:$0xff]
      %v203 = vld [vmem:[%s165 + $0xd8] sm:$0xff]
      %v204 = vld [vmem:[%s165 + $0xe0] sm:$0xff]
      %v205 = vld [vmem:[%s165 + $0xe8] sm:$0xff]
      %v206 = vld [vmem:[%s165 + $0xf0] sm:$0xff]
      %v207 = vld [vmem:[%s165 + $0xf8] sm:$0xff]
      %v208 = vld [vmem:[%s165 + $0x100] sm:$0xff]
      %v209 = vld [vmem:[%s165 + $0x108] sm:$0xff]
      %v210 = vld [vmem:[%s165 + $0x110] sm:$0xff]
      %v211 = vld [vmem:[%s165 + $0x118] sm:$0xff]
      %v212 = vld [vmem:[%s2] sm:$0xff]
      %v213 = vld [vmem:[%s2 + $0x8] sm:$0xff]
      %215 = vset.pattern.permute.xlu0 0
      %216 = vperm.xlu0 %215, %v212
      %v217 = vpop.permute.xlu0 %216
      %220 = vset.pattern.permute.xlu0 0
      %221 = vperm.xlu0 %220, %v213
      %v222 = vpop.permute.xlu0 %221
      %v228 = vunpack.c.l.b16 %v172
      %v229 = vunpack.c.h.b16 %v172
      %v230 = vunpack.c.l.b16 %v173
      %v231 = vunpack.c.l.b16 %v174
      %v232 = vunpack.c.h.b16 %v174
      %v233 = vunpack.c.l.b16 %v175
      %v234 = vpack.c.b16 %v231, %v228
      %v235 = vpack.c.b16 %v232, %v229
      %v236 = vpack.c.b16 %v233, %v230
      %v275 = vunpack.c.l.b16 %v176
      %v276 = vunpack.c.h.b16 %v176
      %v277 = vunpack.c.l.b16 %v177
      %v278 = vunpack.c.h.b16 %v177
      %v279 = vunpack.c.l.b16 %v178
      %v280 = vunpack.c.h.b16 %v178
      %v281 = vunpack.c.l.b16 %v179
      %v282 = vunpack.c.h.b16 %v179
      %v283 = vunpack.c.l.b16 %v180
      %v284 = vunpack.c.h.b16 %v180
      %v285 = vunpack.c.l.b16 %v181
      %v286 = vunpack.c.h.b16 %v181
      %v287 = vunpack.c.l.b16 %v182
      %v288 = vunpack.c.h.b16 %v182
      %v289 = vunpack.c.l.b16 %v183
      %v290 = vunpack.c.h.b16 %v183
      %v291 = vunpack.c.l.b16 %v184
      %v292 = vunpack.c.h.b16 %v184
      %v293 = vunpack.c.l.b16 %v185
      %v294 = vunpack.c.h.b16 %v185
      %v295 = vunpack.c.l.b16 %v186
      %v296 = vunpack.c.h.b16 %v186
      %v297 = vunpack.c.l.b16 %v187
      %v298 = vunpack.c.h.b16 %v187
      %v299 = vunpack.c.l.b16 %v188
      %v300 = vunpack.c.h.b16 %v188
      %v301 = vunpack.c.l.b16 %v189
      %v302 = vunpack.c.h.b16 %v189
      %v303 = vunpack.c.l.b16 %v190
      %v304 = vunpack.c.h.b16 %v190
      %v305 = vunpack.c.l.b16 %v191
      %v306 = vunpack.c.h.b16 %v191
      %v307 = vunpack.c.l.b16 %v192
      %v308 = vunpack.c.h.b16 %v192
      %v309 = vunpack.c.l.b16 %v193
      %v310 = vunpack.c.h.b16 %v193
      %v311 = vunpack.c.l.b16 %v194
      %v312 = vunpack.c.h.b16 %v194
      %v313 = vunpack.c.l.b16 %v195
      %v314 = vunpack.c.h.b16 %v195
      %v315 = vunpack.c.l.b16 %v196
      %v316 = vunpack.c.h.b16 %v196
      %v317 = vunpack.c.l.b16 %v197
      %v318 = vunpack.c.h.b16 %v197
      %v319 = vunpack.c.l.b16 %v198
      %v320 = vunpack.c.h.b16 %v198
      %v321 = vunpack.c.l.b16 %v199
      %v322 = vunpack.c.h.b16 %v199
      %v323 = vunpack.c.l.b16 %v200
      %v324 = vunpack.c.h.b16 %v200
      %v325 = vunpack.c.l.b16 %v201
      %v326 = vunpack.c.h.b16 %v201
      %v327 = vunpack.c.l.b16 %v202
      %v328 = vunpack.c.h.b16 %v202
      %v329 = vunpack.c.l.b16 %v203
      %v330 = vunpack.c.h.b16 %v203
      %v331 = vunpack.c.l.b16 %v204
      %v332 = vunpack.c.h.b16 %v204
      %v333 = vunpack.c.l.b16 %v205
      %v334 = vunpack.c.h.b16 %v205
      %v335 = vunpack.c.l.b16 %v206
      %v336 = vunpack.c.h.b16 %v206
      %v337 = vunpack.c.l.b16 %v207
      %v338 = vunpack.c.h.b16 %v207
      %v339 = vunpack.c.l.b16 %v208
      %v340 = vunpack.c.h.b16 %v208
      %v341 = vunpack.c.l.b16 %v209
      %v342 = vunpack.c.h.b16 %v209
      %v343 = vunpack.c.l.b16 %v210
      %v344 = vunpack.c.h.b16 %v210
      %v345 = vunpack.c.l.b16 %v211
      %v346 = vunpack.c.h.b16 %v211
      %v347 = vpack.c.b16 %v277, %v275
      %v348 = vpack.c.b16 %v278, %v276
      %v349 = vpack.c.b16 %v281, %v279
      %v350 = vpack.c.b16 %v282, %v280
      %v351 = vpack.c.b16 %v285, %v283
      %v352 = vpack.c.b16 %v286, %v284
      %v353 = vpack.c.b16 %v289, %v287
      %v354 = vpack.c.b16 %v290, %v288
      %v355 = vpack.c.b16 %v293, %v291
      %v356 = vpack.c.b16 %v294, %v292
      %v357 = vpack.c.b16 %v297, %v295
      %v358 = vpack.c.b16 %v298, %v296
      %v359 = vpack.c.b16 %v301, %v299
      %v360 = vpack.c.b16 %v302, %v300
      %v361 = vpack.c.b16 %v305, %v303
      %v362 = vpack.c.b16 %v306, %v304
      %v363 = vpack.c.b16 %v309, %v307
      %v364 = vpack.c.b16 %v310, %v308
      %v365 = vpack.c.b16 %v313, %v311
      %v366 = vpack.c.b16 %v314, %v312
      %v367 = vpack.c.b16 %v317, %v315
      %v368 = vpack.c.b16 %v318, %v316
      %v369 = vpack.c.b16 %v321, %v319
      %v370 = vpack.c.b16 %v322, %v320
      %v371 = vpack.c.b16 %v325, %v323
      %v372 = vpack.c.b16 %v326, %v324
      %v373 = vpack.c.b16 %v329, %v327
      %v374 = vpack.c.b16 %v330, %v328
      %v375 = vpack.c.b16 %v333, %v331
      %v376 = vpack.c.b16 %v334, %v332
      %v377 = vpack.c.b16 %v337, %v335
      %v378 = vpack.c.b16 %v338, %v336
      %v379 = vpack.c.b16 %v341, %v339
      %v380 = vpack.c.b16 %v342, %v340
      %v381 = vpack.c.b16 %v345, %v343
      %v382 = vpack.c.b16 %v346, %v344
      %vm419 = vcmask 261120
      %v421 = vsel %vm419, %v236, 0
      %423 = vmatprep.subr.bf16.mxu0 %v362
      %424 = vmatpush1.bf16.msra.mxu0 %v361
      %425 = vmatprep.subr.bf16.mxu0 %v360
      %426 = vmatpush1.bf16.msra.mxu0 %v359
      %427 = vmatprep.subr.bf16.mxu0 %v358
      %428 = vmatpush1.bf16.msra.mxu0 %v357
      %429 = vmatprep.subr.bf16.mxu0 %v356
      %430 = vmatpush1.bf16.msra.mxu0 %v355
      %431 = vmatprep.subr.bf16.mxu0 %v354
      %432 = vmatpush1.bf16.msra.mxu0 %v353
      %433 = vmatprep.subr.bf16.mxu0 %v352
      %434 = vmatpush1.bf16.msra.mxu0 %v351
      %435 = vmatprep.subr.bf16.mxu0 %v350
      %436 = vmatpush1.bf16.msra.mxu0 %v349
      %437 = vmatprep.subr.bf16.mxu0 %v348
      %438 = vmatpush1.bf16.msra.mxu0 %v347
      %439 = vmatprep.subr.bf16.mxu0 %v378
      %440 = vmatpush2.bf16.msra.mxu0 %v377
      %441 = vmatprep.subr.bf16.mxu0 %v376
      %442 = vmatpush2.bf16.msra.mxu0 %v375
      %443 = vmatprep.subr.bf16.mxu0 %v374
      %444 = vmatpush2.bf16.msra.mxu0 %v373
      %445 = vmatprep.subr.bf16.mxu0 %v372
      %446 = vmatpush2.bf16.msra.mxu0 %v371
      %447 = vmatprep.subr.bf16.mxu0 %v370
      %448 = vmatpush2.bf16.msra.mxu0 %v369
      %449 = vmatprep.subr.bf16.mxu0 %v368
      %450 = vmatpush2.bf16.msra.mxu0 %v367
      %451 = vmatprep.subr.bf16.mxu0 %v366
      %452 = vmatpush2.bf16.msra.mxu0 %v365
      %453 = vmatprep.subr.bf16.mxu0 %v364
      %454 = vmatpush2.bf16.msra.mxu0 %v363
      %455 = vmatprep.mubr.bf16.mxu0 %v235
      %456 = vmatmul.mubr.bf16.gmra.mxu0 %v234
      %v457 = vpop.f32.mrf.mxu0
      %v458 = vadd.f32 %v217, %v457
      %v459 = vpop.f32.mrf.mxu0
      %v460 = vadd.f32 %v217, %v459
      %v461 = vpop.f32.mrf.mxu0
      %v462 = vadd.f32 %v222, %v461
      %v463 = vpop.f32.mrf.mxu0
      %v464 = vadd.f32 %v222, %v463
      %465 = vdwg.mxu0
      %466 = vmatprep.subr.bf16.mxu0 0
      %467 = vmatpush1.bf16.msra.mxu0 0
      %468 = vmatprep.subr.bf16.mxu0 0
      %469 = vmatpush1.bf16.msra.mxu0 0
      %470 = vmatprep.subr.bf16.mxu0 0
      %471 = vmatpush1.bf16.msra.mxu0 0
      %472 = vmatprep.subr.bf16.mxu0 0
      %473 = vmatpush1.bf16.msra.mxu0 0
      %474 = vmatprep.subr.bf16.mxu0 0
      %475 = vmatpush1.bf16.msra.mxu0 0
      %476 = vmatprep.subr.bf16.mxu0 0
      %477 = vmatpush1.bf16.msra.mxu0 0
      %478 = vmatprep.subr.bf16.mxu0 %v382
      %479 = vmatpush1.bf16.msra.mxu0 %v381
      %480 = vmatprep.subr.bf16.mxu0 %v380
      %481 = vmatpush1.bf16.msra.mxu0 %v379
      %482 = vmatprep.subr.bf16.mxu0 0
      %483 = vmatpush2.bf16.msra.mxu0 0
      %484 = vmatprep.subr.bf16.mxu0 0
      %485 = vmatpush2.bf16.msra.mxu0 0
      %486 = vmatprep.subr.bf16.mxu0 0
      %487 = vmatpush2.bf16.msra.mxu0 0
      %488 = vmatprep.subr.bf16.mxu0 0
      %489 = vmatpush2.bf16.msra.mxu0 0
      %490 = vmatprep.subr.bf16.mxu0 0
      %491 = vmatpush2.bf16.msra.mxu0 0
      %492 = vmatprep.subr.bf16.mxu0 0
      %493 = vmatpush2.bf16.msra.mxu0 0
      %494 = vmatprep.subr.bf16.mxu0 0
      %495 = vmatpush2.bf16.msra.mxu0 0
      %496 = vmatprep.subr.bf16.mxu0 0
      %497 = vmatpush2.bf16.msra.mxu0 0
      %498 = vmatprep.mubr.bf16.mxu0 0
      %499 = vmatmul.mubr.bf16.gmra.mxu0 %v421
      %v500 = vpop.f32.mrf.mxu0
      %v501 = vadd.f32 %v458, %v500
      %v502 = vpop.f32.mrf.mxu0
      %v503 = vadd.f32 %v460, %v502
      %v504 = vpop.f32.mrf.mxu0
      %v505 = vadd.f32 %v462, %v504
      %v506 = vpop.f32.mrf.mxu0
      %v507 = vadd.f32 %v464, %v506
      %508 = vdwg.mxu0
      %v509 = vmax.f32 %v501, 0.0
      %v510 = vmax.f32 %v503, 0.0
      %v511 = vmax.f32 %v505, 0.0
      %v512 = vmax.f32 %v507, 0.0
      %v513 = vpack.c.bf16 %v511, %v509
      %v514 = vpack.c.bf16 %v512, %v510
      %v517 = vunpack.c.l.b16 %v513
      %v518 = vunpack.c.l.b16 %v514
      %v519 = vunpack.c.h.b16 %v513
      %v520 = vunpack.c.h.b16 %v514
      %v521 = vpack.c.b16 %v518, %v517
      %v522 = vpack.c.b16 %v520, %v519
      %525 = vst [vmem:[%s170] sm:$0xff] %v521
      %526 = vst [vmem:[%s170 + $0x8] sm:$0xff] %v522
      %p527 = scmp.lt.s32.totalorder %s14, 1
      %s528 = scalar_select %p527, %s14, 1
      %s529 = smul.addr %s528, 4
      %s530 = smul.addr %s529, 4
      %s531 = scalar_lea.vmem %s3, %s530
      // Predicated region
      $region33: #{unet_forward.10} parent=31 // pred_check
        %p532 = pneg %p100
      $region34: #{unet_forward.10} parent=31 // pred_check_branch
        %534 = sbr.rel (%p532) target = $region36
      $region35: #{unet_forward.10} parent=31 // pred_region
        _
      $region36: #{unet_forward.10} parent=31 // pred_fallthru
        _
    $region32: #{unet_forward.10} parent=5 // pred_fallthru
      _
    %p535 = scmp.le.s32.totalorder 2, %s9
    // Predicated region
    $region37: #{unet_forward.10} parent=5 // pred_check
      %p536 = pneg %p535
    $region38: #{unet_forward.10} parent=5 // pred_check_branch
      %538 = sbr.rel (%p536) target = $region40
    $region39: #{unet_forward.10} parent=5 // pred_region
      %s539 = ssub.s32 %s9, 2
      // Predicated region
      $region41: #{unet_forward.10} parent=39 // pred_check
        %p540 = pneg %p106
      $region42: #{unet_forward.10} parent=39 // pred_check_branch
        %542 = sbr.rel (%p540) target = $region44
      $region43: #{unet_forward.10} parent=39 // pred_region
        %p543 = scmp.lt.s32.totalorder %s15, 1
        %s544 = scalar_select %p543, %s15, 1
        %s545 = smul.addr %s544, 4
        %s546 = smul.addr %s545, 4
        %s547 = scalar_lea.vmem %s3, %s546
      $region44: #{unet_forward.10} parent=39 // pred_fallthru
        _
    $region40: #{unet_forward.10} parent=5 // pred_fallthru
      _
  $region6: #{unet_forward.10} parent=0 // loop_footer
    %s13 = sadd.s32 1, %s9
  $region7: #{unet_forward.10} parent=0 // loop_footer_branch
    %8 = sbr.rel target = $region3
  $region8: #{unet_forward.10} parent=0 // loop_exit
    _

// kernel: unet_forward.11
$region0: #{unet_forward.11}
  #allocation0 [shape = 'u32[]', space=smem, size = 0x4, offset = 0x4, fixed_abs, tag = 'smem constant byte address 0x4 - core index']
  #allocation1 [shape = 'u32[144,128]{1,0:T(1,128)}', space=vmem, size = 0x12000, scoped, tag = 'internal scratch']
  %s0 = inlined_call_operand.vmem [shape: bf16[2,144,256], index: 0, kind: input, shape index: {}]
  %s1 = inlined_call_operand.vmem [shape: bf16[2,144], index: 1, kind: input, shape index: {}]
  %s2 = inlined_call_operand.vmem [shape: f32[2,1], index: 2, kind: input, shape index: {}]
  %s3 = inlined_call_operand.vmem [shape: f32[2,2,256], index: 3, kind: output, shape index: {}]
  %s4 = sld [smem:[#allocation0]]
  $region45: #{unet_forward.11} parent=0
    _
  %s6 = ssub.s32 1, %s4
  %s7 = scalar_select 0, %s6, %s4
  loop: start=0, step=1, limit=4
  $region2: #{unet_forward.11} parent=0 // loop_pre_header
    _
  $region3: #{unet_forward.11} parent=0 // loop_header
    %s9 = sphi 0, %s13
    %p10 = scmp.ge.s32.totalorder %s9, 4
    %s19 = sphi 0, %s21
    %s22 = sphi 0, %s19
    %s23 = sphi 0, %s22
    %s39 = sphi 0, %s23
    %s43 = sphi 0, %s43
    %s45 = sphi 0, %s43
    %s46 = sphi 0, %s45
    %s60 = sphi 0, %s46
    %s64 = sphi 0, %s64
    %s66 = sphi 0, %s64
    %s67 = sphi 0, %s66
    %s81 = sphi 0, %s67
    %s87 = sphi 0, %s89
    %s90 = sphi 0, %s87
    %s91 = sphi 0, %s90
    %s107 = sphi 0, %s91
  $region4: #{unet_forward.11} parent=0 // loop_header_branch
    %12 = sbr.rel (%p10) target = $region8
  $region5: #{unet_forward.11} parent=0 // loop_body
    %s14 = ssub.s32 %s9, 1
    %s15 = ssub.s32 %s9, 2
    %s16 = sadd.s32 %s9, 1
    %s17 = ssub.s32 %s9, %s16
    %p18 = scmp.eq.s32.totalorder %s17, 0
    %s20 = sadd.s32 %s19, 1
    %s21 = scalar_select %p18, %s19, %s20
    %p24 = pneg %p18
    %p25 = scmp.eq.s32.totalorder %s9, 1
    %p26 = por %p24, %p25
    %p27 = scmp.ne.s32.totalorder %s19, %s22
    %p28 = scmp.eq.s32.totalorder %s9, 0
    %p29 = por %p27, %p28
    %p30 = scmp.ne.s32.totalorder %s19, %s22
    %p31 = scmp.eq.s32.totalorder %s14, 1
    %p32 = por %p30, %p31
    %p33 = scmp.ne.s32.totalorder %s22, %s23
    %p34 = scmp.eq.s32.totalorder %s14, 0
    %p35 = por %p33, %p34
    %p36 = scmp.ne.s32.totalorder %s22, %s23
    %p37 = scmp.eq.s32.totalorder %s15, 1
    %p38 = por %p36, %p37
    %p40 = scmp.ne.s32.totalorder %s23, %s39
    %p41 = scmp.eq.s32.totalorder %s15, 0
    %p42 = por %p40, %p41
    %s44 = sadd.s32 %s43, 1
    %p47 = scmp.eq.s32.totalorder %s9, 1
    %p48 = scmp.ne.s32.totalorder %s43, %s45
    %p49 = scmp.eq.s32.totalorder %s9, 0
    %p50 = por %p48, %p49
    %p51 = scmp.ne.s32.totalorder %s43, %s45
    %p52 = scmp.eq.s32.totalorder %s14, 1
    %p53 = por %p51, %p52
    %p54 = scmp.ne.s32.totalorder %s45, %s46
    %p55 = scmp.eq.s32.totalorder %s14, 0
    %p56 = por %p54, %p55
    %p57 = scmp.ne.s32.totalorder %s45, %s46
    %p58 = scmp.eq.s32.totalorder %s15, 1
    %p59 = por %p57, %p58
    %p61 = scmp.ne.s32.totalorder %s46, %s60
    %p62 = scmp.eq.s32.totalorder %s15, 0
    %p63 = por %p61, %p62
    %s65 = sadd.s32 %s64, 1
    %p68 = scmp.eq.s32.totalorder %s9, 1
    %p69 = scmp.ne.s32.totalorder %s64, %s66
    %p70 = scmp.eq.s32.totalorder %s9, 0
    %p71 = por %p69, %p70
    %p72 = scmp.ne.s32.totalorder %s64, %s66
    %p73 = scmp.eq.s32.totalorder %s14, 1
    %p74 = por %p72, %p73
    %p75 = scmp.ne.s32.totalorder %s66, %s67
    %p76 = scmp.eq.s32.totalorder %s14, 0
    %p77 = por %p75, %p76
    %p78 = scmp.ne.s32.totalorder %s66, %s67
    %p79 = scmp.eq.s32.totalorder %s15, 1
    %p80 = por %p78, %p79
    %p82 = scmp.ne.s32.totalorder %s67, %s81
    %p83 = scmp.eq.s32.totalorder %s15, 0
    %p84 = por %p82, %p83
    %s85 = ssub.s32 %s9, %s16
    %p86 = scmp.eq.s32.totalorder %s85, 0
    %s88 = sadd.s32 %s87, 1
    %s89 = scalar_select %p86, %s87, %s88
    %p92 = pneg %p86
    %p93 = scmp.eq.s32.totalorder %s9, 1
    %p94 = por %p92, %p93
    %p95 = scmp.ne.s32.totalorder %s87, %s90
    %p96 = scmp.eq.s32.totalorder %s9, 0
    %p97 = por %p95, %p96
    %p98 = scmp.ne.s32.totalorder %s87, %s90
    %p99 = scmp.eq.s32.totalorder %s14, 1
    %p100 = por %p98, %p99
    %p101 = scmp.ne.s32.totalorder %s90, %s91
    %p102 = scmp.eq.s32.totalorder %s14, 0
    %p103 = por %p101, %p102
    %p104 = scmp.ne.s32.totalorder %s90, %s91
    %p105 = scmp.eq.s32.totalorder %s15, 1
    %p106 = por %p104, %p105
    %p108 = scmp.ne.s32.totalorder %s91, %s107
    %p109 = scmp.eq.s32.totalorder %s15, 0
    %p110 = por %p108, %p109
    %p111 = scmp.le.s32.totalorder 1, %s9
    %p112 = scmp.lt.s32.totalorder %s9, 3
    %p113 = pnand %p111, %p112
    %p114 = pneg %p113
    // Predicated region
    $region9: #{unet_forward.11} parent=5 // pred_check
      _
    $region10: #{unet_forward.11} parent=5 // pred_check_branch
      %116 = sbr.rel (%p113) target = $region12
    $region11: #{unet_forward.11} parent=5 // pred_region
      %s117 = ssub.s32 %s9, 1
      // Predicated region
      $region13: #{unet_forward.11} parent=11 // pred_check
        %p118 = pneg %p56
      $region14: #{unet_forward.11} parent=11 // pred_check_branch
        %120 = sbr.rel (%p118) target = $region16
      $region15: #{unet_forward.11} parent=11 // pred_region
        _
      $region16: #{unet_forward.11} parent=11 // pred_fallthru
        _
      // Predicated region
      $region17: #{unet_forward.11} parent=11 // pred_check
        %p121 = pneg %p77
      $region18: #{unet_forward.11} parent=11 // pred_check_branch
        %123 = sbr.rel (%p121) target = $region20
      $region19: #{unet_forward.11} parent=11 // pred_region
        _
      $region20: #{unet_forward.11} parent=11 // pred_fallthru
        _
    $region12: #{unet_forward.11} parent=5 // pred_fallthru
      _
    %p124 = scmp.lt.s32.totalorder %s9, 2
    // Predicated region
    $region21: #{unet_forward.11} parent=5 // pred_check
      %p125 = pneg %p124
    $region22: #{unet_forward.11} parent=5 // pred_check_branch
      %127 = sbr.rel (%p125) target = $region24
    $region23: #{unet_forward.11} parent=5 // pred_region
      // Predicated region
      $region25: #{unet_forward.11} parent=23 // pred_check
        %p128 = pneg %p29
      $region26: #{unet_forward.11} parent=23 // pred_check_branch
        %130 = sbr.rel (%p128) target = $region28
      $region27: #{unet_forward.11} parent=23 // pred_region
        %p131 = scmp.lt.s32.totalorder %s9, 1
        %s132 = scalar_select %p131, %s9, 1
        %s133 = smul.addr %s132, 36
        %s134 = smul.addr %s133, 4
        %s135 = scalar_lea.vmem %s0, %s134
      $region28: #{unet_forward.11} parent=23 // pred_fallthru
        _
    $region24: #{unet_forward.11} parent=5 // pred_fallthru
      _
    %p136 = scmp.le.s32.totalorder 1, %s9
    %p137 = scmp.lt.s32.totalorder %s9, 3
    %p138 = pnand %p136, %p137
    %p139 = pneg %p138
    // Predicated region
    $region29: #{unet_forward.11} parent=5 // pred_check
      _
    $region30: #{unet_forward.11} parent=5 // pred_check_branch
      %141 = sbr.rel (%p138) target = $region32
    $region31: #{unet_forward.11} parent=5 // pred_region
      %s142 = ssub.s32 %s9, 1
      %p143 = scmp.lt.s32.totalorder %s14, 1
      %s144 = scalar_select %p143, %s14, 1
      %s145 = smul.addr %s144, 36
      %s146 = smul.addr %s145, 4
      %s147 = scalar_lea.vmem %s0, %s146
      %p148 = pneg %p35
      %p149 = pneg %p32
      %p150 = pneg %p56
      %p151 = pneg %p53
      %p152 = pneg %p77
      %p153 = pneg %p74
      %p154 = pneg %p103
      %p155 = pneg %p100
      %p156 = scmp.lt.s32.totalorder %s14, 1
      %s157 = scalar_select %p156, %s14, 1
      %s158 = smul.addr %s157, 2
      %s159 = smul.addr %s158, 2
      %s160 = scalar_lea.vmem %s3, %s159
      %p161 = scmp.lt.s32.totalorder %s14, 1
      %s162 = scalar_select %p161, %s14, 1
      %s163 = smul.addr %s162, 36
      %s164 = smul.addr %s163, 4
      %s165 = scalar_lea.vmem %s0, %s164
      %p166 = scmp.lt.s32.totalorder %s14, 1
      %s167 = scalar_select %p166, %s14, 1
      %s168 = smul.addr %s167, 2
      %s169 = smul.addr %s168, 2
      %s170 = scalar_lea.vmem %s3, %s169
      %v172 = vld [vmem:[%s1] sm:$0x3]
      %v173 = vld [vmem:[%s165] sm:$0xff]
      %v174 = vld [vmem:[%s165 + $0x8] sm:$0xff]
      %v175 = vld [vmem:[%s165 + $0x10] sm:$0xff]
      %v176 = vld [vmem:[%s165 + $0x18] sm:$0xff]
      %v177 = vld [vmem:[%s165 + $0x20] sm:$0xff]
      %v178 = vld [vmem:[%s165 + $0x28] sm:$0xff]
      %v179 = vld [vmem:[%s165 + $0x30] sm:$0xff]
      %v180 = vld [vmem:[%s165 + $0x38] sm:$0xff]
      %v181 = vld [vmem:[%s165 + $0x40] sm:$0xff]
      %v182 = vld [vmem:[%s165 + $0x48] sm:$0xff]
      %v183 = vld [vmem:[%s165 + $0x50] sm:$0xff]
      %v184 = vld [vmem:[%s165 + $0x58] sm:$0xff]
      %v185 = vld [vmem:[%s165 + $0x60] sm:$0xff]
      %v186 = vld [vmem:[%s165 + $0x68] sm:$0xff]
      %v187 = vld [vmem:[%s165 + $0x70] sm:$0xff]
      %v188 = vld [vmem:[%s165 + $0x78] sm:$0xff]
      %v189 = vld [vmem:[%s165 + $0x80] sm:$0xff]
      %v190 = vld [vmem:[%s165 + $0x88] sm:$0xff]
      %v191 = vld [vmem:[%s2] sm:$0x3]
      %193 = vset.pattern.permute.xlu0 0
      %194 = vperm.xlu0 %193, %v191
      %v195 = vpop.permute.xlu0 %194
      %v199 = vunpack.c.l.s4 1966171168
      %v200 = vunpack.c.0.s8 %v199
      %v201 = vlaneseq
      %v202 = vshrl.u32 %v201, 7
      %v203 = vsub.s32 %v200, %v202
      %v204 = vrot.slane %v172, %v203
      %v205 = vcombine.high %v204, %v204
      %v207 = vunpack.c.l.s4 1966171168
      %v208 = vunpack.c.0.s8 %v207
      %v209 = vlaneseq
      %v210 = vshrl.u32 %v209, 7
      %v211 = vsub.s32 %v208, %v210
      %v212 = vrot.slane %v204, %v211
      %v214 = vunpack.c.l.s4 1966171168
      %v215 = vunpack.c.0.s8 %v214
      %v216 = vlaneseq
      %v217 = vshrl.u32 %v216, 7
      %v218 = vsub.s32 %v215, %v217
      %v219 = vrot.slane %v205, %v218
      %v239 = vunpack.c.l.b16 %v173
      %v240 = vunpack.c.h.b16 %v173
      %v241 = vunpack.c.l.b16 %v174
      %v242 = vunpack.c.h.b16 %v174
      %v243 = vunpack.c.l.b16 %v175
      %v244 = vunpack.c.h.b16 %v175
      %v245 = vunpack.c.l.b16 %v176
      %v246 = vunpack.c.h.b16 %v176
      %v247 = vunpack.c.l.b16 %v177
      %v248 = vunpack.c.h.b16 %v177
      %v249 = vunpack.c.l.b16 %v178
      %v250 = vunpack.c.h.b16 %v178
      %v251 = vunpack.c.l.b16 %v179
      %v252 = vunpack.c.h.b16 %v179
      %v253 = vunpack.c.l.b16 %v180
      %v254 = vunpack.c.h.b16 %v180
      %v255 = vunpack.c.l.b16 %v181
      %v256 = vunpack.c.h.b16 %v181
      %v257 = vunpack.c.l.b16 %v182
      %v258 = vunpack.c.h.b16 %v182
      %v259 = vunpack.c.l.b16 %v183
      %v260 = vunpack.c.h.b16 %v183
      %v261 = vunpack.c.l.b16 %v184
      %v262 = vunpack.c.h.b16 %v184
      %v263 = vunpack.c.l.b16 %v185
      %v264 = vunpack.c.h.b16 %v185
      %v265 = vunpack.c.l.b16 %v186
      %v266 = vunpack.c.h.b16 %v186
      %v267 = vunpack.c.l.b16 %v187
      %v268 = vunpack.c.h.b16 %v187
      %v269 = vunpack.c.l.b16 %v188
      %v270 = vunpack.c.h.b16 %v188
      %v271 = vunpack.c.l.b16 %v189
      %v272 = vunpack.c.h.b16 %v189
      %v273 = vunpack.c.l.b16 %v190
      %v274 = vunpack.c.h.b16 %v190
      %v275 = vpack.c.b16 %v241, %v239
      %v276 = vpack.c.b16 %v242, %v240
      %v277 = vpack.c.b16 %v245, %v243
      %v278 = vpack.c.b16 %v246, %v244
      %v279 = vpack.c.b16 %v249, %v247
      %v280 = vpack.c.b16 %v250, %v248
      %v281 = vpack.c.b16 %v253, %v251
      %v282 = vpack.c.b16 %v254, %v252
      %v283 = vpack.c.b16 %v257, %v255
      %v284 = vpack.c.b16 %v258, %v256
      %v285 = vpack.c.b16 %v261, %v259
      %v286 = vpack.c.b16 %v262, %v260
      %v287 = vpack.c.b16 %v265, %v263
      %v288 = vpack.c.b16 %v266, %v264
      %v289 = vpack.c.b16 %v269, %v267
      %v290 = vpack.c.b16 %v270, %v268
      %v291 = vpack.c.b16 %v273, %v271
      %v292 = vpack.c.b16 %v274, %v272
      %vm311 = vcmask 130048
      %v313 = vsel %vm311, %v219, 0
      %315 = vmatprep.subr.bf16.mxu0 %v290
      %316 = vmatpush1.bf16.msra.mxu0 %v289
      %317 = vmatprep.subr.bf16.mxu0 %v288
      %318 = vmatpush1.bf16.msra.mxu0 %v287
      %319 = vmatprep.subr.bf16.mxu0 %v286
      %320 = vmatpush1.bf16.msra.mxu0 %v285
      %321 = vmatprep.subr.bf16.mxu0 %v284
      %322 = vmatpush1.bf16.msra.mxu0 %v283
      %323 = vmatprep.subr.bf16.mxu0 %v282
      %324 = vmatpush1.bf16.msra.mxu0 %v281
      %325 = vmatprep.subr.bf16.mxu0 %v280
      %326 = vmatpush1.bf16.msra.mxu0 %v279
      %327 = vmatprep.subr.bf16.mxu0 %v278
      %328 = vmatpush1.bf16.msra.mxu0 %v277
      %329 = vmatprep.subr.bf16.mxu0 %v276
      %330 = vmatpush1.bf16.msra.mxu0 %v275
      %331 = vmatprep.subr.bf16.mxu0 0
      %332 = vmatpush2.bf16.msra.mxu0 0
      %333 = vmatprep.subr.bf16.mxu0 0
      %334 = vmatpush2.bf16.msra.mxu0 0
      %335 = vmatprep.subr.bf16.mxu0 0
      %336 = vmatpush2.bf16.msra.mxu0 0
      %337 = vmatprep.subr.bf16.mxu0 0
      %338 = vmatpush2.bf16.msra.mxu0 0
      %339 = vmatprep.subr.bf16.mxu0 0
      %340 = vmatpush2.bf16.msra.mxu0 0
      %341 = vmatprep.subr.bf16.mxu0 0
      %342 = vmatpush2.bf16.msra.mxu0 0
      %343 = vmatprep.subr.bf16.mxu0 0
      %344 = vmatpush2.bf16.msra.mxu0 0
      %345 = vmatprep.subr.bf16.mxu0 %v292
      %346 = vmatpush2.bf16.msra.mxu0 %v291
      %347 = vmatprep.mubr.bf16.mxu0 %v313
      %348 = vmatmul.mubr.bf16.gmra.mxu0 %v212
      %v349 = vpop.f32.mrf.mxu0
      %v350 = vadd.f32 %v195, %v349
      %v351 = vpop.f32.mrf.mxu0
      %v352 = vadd.f32 %v195, %v351
      %v353 = vpop.f32.mrf.mxu0
      %v354 = vpop.f32.mrf.mxu0
      %355 = vdwg.mxu0
      %v356 = vxor.u32 %v350, 2147483648
      %v357 = vxor.u32 %v352, 2147483648
      %v358 = vmul.f32 %v356, 1.442695
      %v359 = vpow.pop %v358
      %v360 = vmul.f32 %v357, 1.442695
      %v361 = vpow.pop %v360
      %v362 = vadd.f32 %v359, 1.0
      %v363 = vadd.f32 %v361, 1.0
      %v364 = vrcp.pop %v362
      %v365 = vmul.f32 1.0, %v364
      %v366 = vrcp.pop %v363
      %v367 = vmul.f32 1.0, %v366
      %v370 = vcombine.low %v365, %v367
      %v372 = vunpack.c.l.s4 1983009808
      %v373 = vunpack.c.0.s8 %v372
      %v374 = vlaneseq
      %v375 = vshrl.u32 %v374, 7
      %v376 = vsub.s32 %v373, %v375
      %v377 = vrot.slane %v370, %v376
      %379 = vst [vmem:[%s170] sm:$0xf] %v377
      %p380 = scmp.lt.s32.totalorder %s14, 1
      %s381 = scalar_select %p380, %s14, 1
      %s382 = smul.addr %s381, 2
      %s383 = smul.addr %s382, 2
      %s384 = scalar_lea.vmem %s3, %s383
      // Predicated region
      $region33: #{unet_forward.11} parent=31 // pred_check
        %p385 = pneg %p100
      $region34: #{unet_forward.11} parent=31 // pred_check_branch
        %387 = sbr.rel (%p385) target = $region36
      $region35: #{unet_forward.11} parent=31 // pred_region
        _
      $region36: #{unet_forward.11} parent=31 // pred_fallthru
        _
    $region32: #{unet_forward.11} parent=5 // pred_fallthru
      _
    %p388 = scmp.le.s32.totalorder 2, %s9
    // Predicated region
    $region37: #{unet_forward.11} parent=5 // pred_check
      %p389 = pneg %p388
    $region38: #{unet_forward.11} parent=5 // pred_check_branch
      %391 = sbr.rel (%p389) target = $region40
    $region39: #{unet_forward.11} parent=5 // pred_region
      %s392 = ssub.s32 %s9, 2
      // Predicated region
      $region41: #{unet_forward.11} parent=39 // pred_check
        %p393 = pneg %p106
      $region42: #{unet_forward.11} parent=39 // pred_check_branch
        %395 = sbr.rel (%p393) target = $region44
      $region43: #{unet_forward.11} parent=39 // pred_region
        %p396 = scmp.lt.s32.totalorder %s15, 1
        %s397 = scalar_select %p396, %s15, 1
        %s398 = smul.addr %s397, 2
        %s399 = smul.addr %s398, 2
        %s400 = scalar_lea.vmem %s3, %s399
      $region44: #{unet_forward.11} parent=39 // pred_fallthru
        _
    $region40: #{unet_forward.11} parent=5 // pred_fallthru
      _
  $region6: #{unet_forward.11} parent=0 // loop_footer
    %s13 = sadd.s32 1, %s9
  $region7: #{unet_forward.11} parent=0 // loop_footer_branch
    %8 = sbr.rel target = $region3
  $region8: #{unet_forward.11} parent=0 // loop_exit
    _

</llo_original>
